<compile_context>
chip_gen: v5e
topology: v5e:2x2
jax: 0.10.0
libtpu: 0.0.40
codegen_flags: <defaults>
</compile_context>

<pallas_src>
import functools

import jax
import jax.numpy as jnp
from jax.experimental import pallas as pl
from jax.experimental.pallas import tpu as pltpu


def _round_up(x: int, m: int) -> int:
    return ((x + m - 1) // m) * m


def _sublane_pack(dtype) -> int:
    # Rows per packed sublane group: f32 -> 8, bf16 -> 16, int8/fp8 -> 32.
    return {4: 8, 2: 16, 1: 32}.get(jnp.dtype(dtype).itemsize, 8)


def _dot_kwargs(precision):
    kw = dict(preferred_element_type=jnp.float32)
    if precision is not None:
        kw["precision"] = precision
    return kw


def _layernorm_rows(x, gamma, beta, eps):
    # One-pass statistics: var = E[x^2] - mean^2 (clamped >= 0); rsqrt -> EUP.
    mean = jnp.mean(x, axis=-1, keepdims=True)
    mean_sq = jnp.mean(x * x, axis=-1, keepdims=True)
    var = jnp.maximum(mean_sq - mean * mean, 0.0)
    return (x - mean) * jax.lax.rsqrt(var + eps) * gamma + beta


def _dfine_gate_kernel_fused(r_ref, h_ref, wr_ref, wh_ref, b_ref, g_ref, be_ref,
                             o_ref, *, d, eps, precision, mxu_dtype):
    # Two (tile, d) x (d, 2d) matmuls fill the wide MXU; gate1/gate2 are
    # lane-aligned static slices (this path is only used when d % 128 == 0).
    r = r_ref[...]
    h = h_ref[...]
    r_mx = r if mxu_dtype is None else r.astype(mxu_dtype)
    h_mx = h if mxu_dtype is None else h.astype(mxu_dtype)
    kw = _dot_kwargs(precision)
    logits = (jnp.dot(r_mx, wr_ref[...], **kw)
              + jnp.dot(h_mx, wh_ref[...], **kw)
              + b_ref[...])
    gates = jax.nn.sigmoid(logits)
    x = gates[:, :d] * r.astype(jnp.float32) + gates[:, d:] * h.astype(jnp.float32)
    o_ref[...] = _layernorm_rows(x, g_ref[...], be_ref[...], eps).astype(o_ref.dtype)


def _dfine_gate_kernel_split(r_ref, h_ref, wr1_ref, wh1_ref, wr2_ref, wh2_ref,
                             b1_ref, b2_ref, g_ref, be_ref, o_ref, *,
                             eps, precision, mxu_dtype):
    # Four (d, d) matmuls: used when d is not a multiple of 128 so no
    # cross-lane chunk of the gate logits is ever needed.
    r = r_ref[...]
    h = h_ref[...]
    r_mx = r if mxu_dtype is None else r.astype(mxu_dtype)
    h_mx = h if mxu_dtype is None else h.astype(mxu_dtype)
    kw = _dot_kwargs(precision)
    logits1 = (jnp.dot(r_mx, wr1_ref[...], **kw)
               + jnp.dot(h_mx, wh1_ref[...], **kw) + b1_ref[...])
    logits2 = (jnp.dot(r_mx, wr2_ref[...], **kw)
               + jnp.dot(h_mx, wh2_ref[...], **kw) + b2_ref[...])
    gate1 = jax.nn.sigmoid(logits1)
    gate2 = jax.nn.sigmoid(logits2)
    x = gate1 * r.astype(jnp.float32) + gate2 * h.astype(jnp.float32)
    o_ref[...] = _layernorm_rows(x, g_ref[...], be_ref[...], eps).astype(o_ref.dtype)


def prepare_dfine_gate_params(weight, bias, gamma, beta, *, param_dtype=None):
    """One-time parameter prep (hoisted off the per-call launch path).

    weight: (2d, 2d) in PyTorch nn.Linear layout (out_features, in_features).
    bias: (2d,).  gamma/beta: (d,).  param_dtype: dtype the MXU weights are
    stored in (pass jnp.bfloat16 for bf16 activations or bf16-MXU f32 callers).

    Returns a dict of device arrays plus *static* python metadata ('d',
    'fused') — not meant to be traced through jit as leaves.
    """
    two_d = weight.shape[0]
    d = two_d // 2
    w_dtype = weight.dtype if param_dtype is None else param_dtype
    #   logits = cat([r, h]) @ W.T + b  ==  r @ W.T[:d, :] + h @ W.T[d:, :] + b
    w_t = jnp.transpose(weight).astype(w_dtype)        # (2d_in, 2d_out)
    wr = w_t[:d, :]                                    # multiplies second_residual
    wh = w_t[d:, :]                                    # multiplies hidden_states
    b = bias.reshape(1, two_d).astype(jnp.float32)
    g = gamma.reshape(1, d).astype(jnp.float32)
    be = beta.reshape(1, d).astype(jnp.float32)
    if d % 128 == 0:
        return dict(d=d, fused=True, wr=wr, wh=wh, b=b, gamma=g, beta=be)
    return dict(d=d, fused=False,
                wr1=wr[:, :d], wr2=wr[:, d:], wh1=wh[:, :d], wh2=wh[:, d:],
                b1=b[:, :d], b2=b[:, d:], gamma=g, beta=be)


def dfine_gate(second_residual, hidden_states, params, *, eps: float = 1e-5,
               tile_rows: int = 512, matmul_precision=None, mxu_dtype=None,
               single_buffer_constants: bool = True):
    """DFineGate forward. second_residual/hidden_states: (B, S, d).
    params: output of prepare_dfine_gate_params.
    matmul_precision: e.g. jax.lax.Precision.HIGHEST for strict f32 parity.
    mxu_dtype: e.g. jnp.bfloat16 to run the dots in bf16 for f32 callers."""
    B, S, d_in = second_residual.shape
    d = params["d"]
    assert d_in == d, f"feature dim mismatch: {d_in} vs {d}"
    N = B * S
    dtype = second_residual.dtype
    itemsize = jnp.dtype(dtype).itemsize
    fused = params["fused"]
    w_itemsize = jnp.dtype((params["wr"] if fused else params["wr1"]).dtype).itemsize

    # --- row tile selection ---------------------------------------------------
    pack = _sublane_pack(dtype)
    tile = _round_up(max(tile_rows, pack), pack)
    # Cap so the 1-D grid has >= 2 steps (both v7x TensorCores get work);
    # harmless no-op on single-TC v5e/v6e.
    tile = max(pack, min(tile, _round_up(pl.cdiv(N, 2), pack)))

    # VMEM budget from the hardware with headroom; conservative fallback.
    try:
        vmem_cap = pltpu.get_tpu_info().vmem_capacity_bytes
    except Exception:
        vmem_cap = 64 * 1024 * 1024
    vmem_budget = int(vmem_cap * 3 // 4)

    def _vmem_est(tm: int) -> int:
        streamed = (2 * 2 + 2) * tm * d * itemsize       # r, h double-buffered + out
        weights = 4 * d * d * w_itemsize * (1 if single_buffer_constants else 2)
        smalls = 16 * d * 4                              # biases / gamma / beta
        f32_tmp = 10 * tm * d * 4                        # logits, gates, x, x_hat, ...
        return streamed + weights + smalls + f32_tmp

    while tile > pack and _vmem_est(tile) > vmem_budget:
        tile = max(pack, _round_up(tile // 2, pack))

    # Partial last block (ragged N) is masked by Pallas: no padding copy needed.
    grid = (pl.cdiv(N, tile),)

    r2 = second_residual.reshape(N, d)
    h2 = hidden_states.reshape(N, d)

    # Advisory cost estimate for XLA's scheduler.
    cost = pl.CostEstimate(
        flops=8 * N * d * d + 12 * N * d,
        transcendentals=2 * N * d + N,                   # sigmoid + rsqrt
        bytes_accessed=3 * N * d * itemsize + 4 * d * d * w_itemsize + 16 * d * 4,
    )

    if fused:
        kernel = functools.partial(_dfine_gate_kernel_fused, d=d, eps=eps,
                                   precision=matmul_precision, mxu_dtype=mxu_dtype)
        operands = (r2, h2, params["wr"], params["wh"], params["b"],
                    params["gamma"], params["beta"])
        const_shapes = [(d, 2 * d), (d, 2 * d), (1, 2 * d), (1, d), (1, d)]
    else:
        kernel = functools.partial(_dfine_gate_kernel_split, eps=eps,
                                   precision=matmul_precision, mxu_dtype=mxu_dtype)
        operands = (r2, h2, params["wr1"], params["wh1"], params["wr2"],
                    params["wh2"], params["b1"], params["b2"],
                    params["gamma"], params["beta"])
        const_shapes = [(d, d)] * 4 + [(1, d)] * 4

    row_spec = pl.BlockSpec((tile, d), lambda i: (i, 0))

    def _call(use_single_buffer: bool):
        def const_spec(shape):
            if use_single_buffer:
                # Grid-invariant operand: nothing to pipeline -> single buffer
                # (halves its VMEM footprint at zero perf cost).
                return pl.BlockSpec(shape, lambda i: (0, 0),
                                    pipeline_mode=pl.Buffered(1))
            return pl.BlockSpec(shape, lambda i: (0, 0))

        return pl.pallas_call(
            kernel,
            out_shape=jax.ShapeDtypeStruct((N, d), dtype),
            grid_spec=pltpu.PrefetchScalarGridSpec(
                num_scalar_prefetch=0,
                grid=grid,
                in_specs=[row_spec, row_spec] + [const_spec(s) for s in const_shapes],
                out_specs=row_spec,
            ),
            compiler_params=pltpu.CompilerParams(
                dimension_semantics=("parallel",),
                vmem_limit_bytes=vmem_budget),
            cost_estimate=cost,
        )(*operands)

    if single_buffer_constants:
        try:
            out = _call(True)
        except Exception:
            # Fallback for Pallas builds that reject Buffered(1) on inputs.
            out = _call(False)
    else:
        out = _call(False)

    return out.reshape(B, S, d)


def dfine_gate_reference(second_residual, hidden_states, weight, bias, gamma,
                         beta, eps=1e-5):
    gate_input = jnp.concatenate([second_residual, hidden_states], axis=-1)
    gates = jax.nn.sigmoid(gate_input @ weight.T + bias)
    d = second_residual.shape[-1]
    gate1, gate2 = gates[..., :d], gates[..., d:]
    x = gate1 * second_residual + gate2 * hidden_states
    mean = jnp.mean(x, axis=-1, keepdims=True)
    var = jnp.mean((x - mean) ** 2, axis=-1, keepdims=True)
    return (x - mean) * jax.lax.rsqrt(var + eps) * gamma + beta


if __name__ == "__main__":
    key = jax.random.PRNGKey(0)
    k_r, k_h, k_w, k_b, k_r2, k_h2, k_w2, k_b2 = jax.random.split(key, 8)

    # ---- split-kernel path (d % 128 != 0): d_model = 32 ----
    d_model, batch, seq = 32, 2, 8
    second_residual = jax.random.normal(k_r, (batch, seq, d_model), jnp.float32)
    hidden_states = jax.random.normal(k_h, (batch, seq, d_model), jnp.float32)
    bound = 1.0 / (2 * d_model) ** 0.5
    gate_weight = jax.random.uniform(k_w, (2 * d_model, 2 * d_model),
                                     jnp.float32, -bound, bound)
    gate_bias = jax.random.uniform(k_b, (2 * d_model,), jnp.float32, -bound, bound)
    ln_gamma = jnp.ones((d_model,), jnp.float32)
    ln_beta = jnp.zeros((d_model,), jnp.float32)

    params = prepare_dfine_gate_params(gate_weight, gate_bias, ln_gamma, ln_beta)
    out = dfine_gate(second_residual, hidden_states, params)
    jax.block_until_ready(out)
    ref = dfine_gate_reference(second_residual, hidden_states, gate_weight,
                               gate_bias, ln_gamma, ln_beta)
    assert out.shape == (batch, seq, d_model)
    assert jnp.allclose(out, ref, atol=2e-5, rtol=2e-5), "f32 split-path mismatch"

    # ---- ragged N (partial last block, no padding copy) ----
    r_rag, h_rag = second_residual[:, :7, :], hidden_states[:, :7, :]
    out_rag = dfine_gate(r_rag, h_rag, params)
    jax.block_until_ready(out_rag)
    ref_rag = dfine_gate_reference(r_rag, h_rag, gate_weight, gate_bias,
                                   ln_gamma, ln_beta)
    assert jnp.allclose(out_rag, ref_rag, atol=2e-5, rtol=2e-5), "ragged mismatch"

    # ---- bf16 activations with bf16 MXU weights ----
    params_bf16 = prepare_dfine_gate_params(gate_weight, gate_bias, ln_gamma,
                                            ln_beta, param_dtype=jnp.bfloat16)
    out_bf16 = dfine_gate(second_residual.astype(jnp.bfloat16),
                          hidden_states.astype(jnp.bfloat16), params_bf16)
    jax.block_until_ready(out_bf16)
    assert jnp.allclose(out_bf16.astype(jnp.float32), ref, atol=1e-1), \
        "bf16 mismatch vs f32 reference"

    # ---- fused-kernel path (d % 128 == 0): d_model = 128 ----
    d2 = 128
    r_f = jax.random.normal(k_r2, (batch, seq, d2), jnp.float32)
    h_f = jax.random.normal(k_h2, (batch, seq, d2), jnp.float32)
    bound2 = 1.0 / (2 * d2) ** 0.5
    w_f = jax.random.uniform(k_w2, (2 * d2, 2 * d2), jnp.float32, -bound2, bound2)
    b_f = jax.random.uniform(k_b2, (2 * d2,), jnp.float32, -bound2, bound2)
    g_f = jnp.ones((d2,), jnp.float32)
    be_f = jnp.zeros((d2,), jnp.float32)
    params_f = prepare_dfine_gate_params(w_f, b_f, g_f, be_f)
    out_f = dfine_gate(r_f, h_f, params_f)
    jax.block_until_ready(out_f)
    ref_f = dfine_gate_reference(r_f, h_f, w_f, b_f, g_f, be_f)
    assert jnp.allclose(out_f, ref_f, atol=2e-5, rtol=2e-5), "fused-path mismatch"

    print("KERNEL_OK")
</pallas_src>

<mosaic_0001>
module attributes {stable_mosaic.version = 11 : i64} {
  func.func @_dfine_gate_kernel_split(%arg0: i32, %arg1: memref<8x32xf32, #tpu.memory_space<vmem>>, %arg2: memref<8x32xf32, #tpu.memory_space<vmem>>, %arg3: memref<32x32xf32, #tpu.memory_space<vmem>>, %arg4: memref<32x32xf32, #tpu.memory_space<vmem>>, %arg5: memref<32x32xf32, #tpu.memory_space<vmem>>, %arg6: memref<32x32xf32, #tpu.memory_space<vmem>>, %arg7: memref<1x32xf32, #tpu.memory_space<vmem>>, %arg8: memref<1x32xf32, #tpu.memory_space<vmem>>, %arg9: memref<1x32xf32, #tpu.memory_space<vmem>>, %arg10: memref<1x32xf32, #tpu.memory_space<vmem>>, %arg11: memref<8x32xf32, #tpu.memory_space<vmem>>) attributes {dimension_semantics = [#tpu.dimension_semantics<parallel>], iteration_bounds = array<i64: 2>, scalar_prefetch = 0 : i64, scratch_operands = 0 : i64, tpu.core_type = #tpu.core_type<tc>, window_params = [{transform_indices = @transform_0, window_bounds = array<i64: 8, 32>}, {transform_indices = @transform_1, window_bounds = array<i64: 8, 32>}, {pipeline_mode = #tpu.pipeline_mode<synchronous>, transform_indices = @transform_2, window_bounds = array<i64: 32, 32>}, {pipeline_mode = #tpu.pipeline_mode<synchronous>, transform_indices = @transform_3, window_bounds = array<i64: 32, 32>}, {pipeline_mode = #tpu.pipeline_mode<synchronous>, transform_indices = @transform_4, window_bounds = array<i64: 32, 32>}, {pipeline_mode = #tpu.pipeline_mode<synchronous>, transform_indices = @transform_5, window_bounds = array<i64: 32, 32>}, {pipeline_mode = #tpu.pipeline_mode<synchronous>, transform_indices = @transform_6, window_bounds = array<i64: 1, 32>}, {pipeline_mode = #tpu.pipeline_mode<synchronous>, transform_indices = @transform_7, window_bounds = array<i64: 1, 32>}, {pipeline_mode = #tpu.pipeline_mode<synchronous>, transform_indices = @transform_8, window_bounds = array<i64: 1, 32>}, {pipeline_mode = #tpu.pipeline_mode<synchronous>, transform_indices = @transform_9, window_bounds = array<i64: 1, 32>}, {transform_indices = @transform_10, window_bounds = array<i64: 8, 32>}]} {
    %c0 = arith.constant 0 : index
    %c0_0 = arith.constant 0 : index
    %0 = vector.load %arg1[%c0, %c0_0] : memref<8x32xf32, #tpu.memory_space<vmem>>, vector<8x32xf32>
    %c0_1 = arith.constant 0 : index
    %c0_2 = arith.constant 0 : index
    %1 = vector.load %arg2[%c0_1, %c0_2] : memref<8x32xf32, #tpu.memory_space<vmem>>, vector<8x32xf32>
    %c0_3 = arith.constant 0 : index
    %c0_4 = arith.constant 0 : index
    %2 = vector.load %arg3[%c0_3, %c0_4] : memref<32x32xf32, #tpu.memory_space<vmem>>, vector<32x32xf32>
    %cst = arith.constant dense<0.000000e+00> : vector<8x32xf32>
    %3 = tpu.matmul %0, %2, %cst {dimension_numbers = #tpu.dot_dimension_numbers<[1], [0], [0], [1], [0, 0, 1, 1], [], []>} : vector<8x32xf32>, vector<32x32xf32>, vector<8x32xf32> -> vector<8x32xf32>
    %c0_5 = arith.constant 0 : index
    %c0_6 = arith.constant 0 : index
    %4 = vector.load %arg4[%c0_5, %c0_6] : memref<32x32xf32, #tpu.memory_space<vmem>>, vector<32x32xf32>
    %cst_7 = arith.constant dense<0.000000e+00> : vector<8x32xf32>
    %5 = tpu.matmul %1, %4, %cst_7 {dimension_numbers = #tpu.dot_dimension_numbers<[1], [0], [0], [1], [0, 0, 1, 1], [], []>} : vector<8x32xf32>, vector<32x32xf32>, vector<8x32xf32> -> vector<8x32xf32>
    %6 = arith.addf %3, %5 : vector<8x32xf32>
    %c0_8 = arith.constant 0 : index
    %c0_9 = arith.constant 0 : index
    %7 = vector.load %arg7[%c0_8, %c0_9] : memref<1x32xf32, #tpu.memory_space<vmem>>, vector<1x32xf32>
    %8 = vector.broadcast %7 : vector<1x32xf32> to vector<8x32xf32>
    %9 = arith.addf %6, %8 : vector<8x32xf32>
    %c0_10 = arith.constant 0 : index
    %c0_11 = arith.constant 0 : index
    %10 = vector.load %arg5[%c0_10, %c0_11] : memref<32x32xf32, #tpu.memory_space<vmem>>, vector<32x32xf32>
    %cst_12 = arith.constant dense<0.000000e+00> : vector<8x32xf32>
    %11 = tpu.matmul %0, %10, %cst_12 {dimension_numbers = #tpu.dot_dimension_numbers<[1], [0], [0], [1], [0, 0, 1, 1], [], []>} : vector<8x32xf32>, vector<32x32xf32>, vector<8x32xf32> -> vector<8x32xf32>
    %c0_13 = arith.constant 0 : index
    %c0_14 = arith.constant 0 : index
    %12 = vector.load %arg6[%c0_13, %c0_14] : memref<32x32xf32, #tpu.memory_space<vmem>>, vector<32x32xf32>
    %cst_15 = arith.constant dense<0.000000e+00> : vector<8x32xf32>
    %13 = tpu.matmul %1, %12, %cst_15 {dimension_numbers = #tpu.dot_dimension_numbers<[1], [0], [0], [1], [0, 0, 1, 1], [], []>} : vector<8x32xf32>, vector<32x32xf32>, vector<8x32xf32> -> vector<8x32xf32>
    %14 = arith.addf %11, %13 : vector<8x32xf32>
    %c0_16 = arith.constant 0 : index
    %c0_17 = arith.constant 0 : index
    %15 = vector.load %arg8[%c0_16, %c0_17] : memref<1x32xf32, #tpu.memory_space<vmem>>, vector<1x32xf32>
    %16 = vector.broadcast %15 : vector<1x32xf32> to vector<8x32xf32>
    %17 = arith.addf %14, %16 : vector<8x32xf32>
    %18 = arith.negf %9 : vector<8x32xf32>
    %19 = math.exp %18 : vector<8x32xf32>
    %cst_18 = arith.constant 1.000000e+00 : f32
    %20 = vector.broadcast %cst_18 : f32 to vector<8x32xf32>
    %21 = arith.addf %20, %19 : vector<8x32xf32>
    %22 = arith.divf %20, %21 : vector<8x32xf32>
    %23 = arith.negf %17 : vector<8x32xf32>
    %24 = math.exp %23 : vector<8x32xf32>
    %cst_19 = arith.constant 1.000000e+00 : f32
    %25 = vector.broadcast %cst_19 : f32 to vector<8x32xf32>
    %26 = arith.addf %25, %24 : vector<8x32xf32>
    %27 = arith.divf %25, %26 : vector<8x32xf32>
    %28 = arith.mulf %22, %0 : vector<8x32xf32>
    %29 = arith.mulf %27, %1 : vector<8x32xf32>
    %30 = arith.addf %28, %29 : vector<8x32xf32>
    %c0_20 = arith.constant 0 : index
    %c0_21 = arith.constant 0 : index
    %31 = vector.load %arg9[%c0_20, %c0_21] : memref<1x32xf32, #tpu.memory_space<vmem>>, vector<1x32xf32>
    %c0_22 = arith.constant 0 : index
    %c0_23 = arith.constant 0 : index
    %32 = vector.load %arg10[%c0_22, %c0_23] : memref<1x32xf32, #tpu.memory_space<vmem>>, vector<1x32xf32>
    %cst_24 = arith.constant dense<0.000000e+00> : vector<8xf32>
    %33 = vector.multi_reduction <add>, %30, %cst_24 [1] : vector<8x32xf32> to vector<8xf32>
    %34 = vector.shape_cast %33 : vector<8xf32> to vector<8x1xf32>
    %cst_25 = arith.constant 3.200000e+01 : f32
    %35 = vector.broadcast %cst_25 : f32 to vector<8x1xf32>
    %36 = arith.divf %34, %35 : vector<8x1xf32>
    %37 = arith.mulf %30, %30 : vector<8x32xf32>
    %cst_26 = arith.constant dense<0.000000e+00> : vector<8xf32>
    %38 = vector.multi_reduction <add>, %37, %cst_26 [1] : vector<8x32xf32> to vector<8xf32>
    %39 = vector.shape_cast %38 : vector<8xf32> to vector<8x1xf32>
    %cst_27 = arith.constant 3.200000e+01 : f32
    %40 = vector.broadcast %cst_27 : f32 to vector<8x1xf32>
    %41 = arith.divf %39, %40 : vector<8x1xf32>
    %42 = arith.mulf %36, %36 : vector<8x1xf32>
    %43 = arith.subf %41, %42 : vector<8x1xf32>
    %cst_28 = arith.constant 0.000000e+00 : f32
    %44 = vector.broadcast %cst_28 : f32 to vector<8x1xf32>
    %45 = arith.maximumf %43, %44 : vector<8x1xf32>
    %46 = vector.broadcast %36 : vector<8x1xf32> to vector<8x32xf32>
    %47 = arith.subf %30, %46 : vector<8x32xf32>
    %cst_29 = arith.constant 9.99999974E-6 : f32
    %48 = vector.broadcast %cst_29 : f32 to vector<8x1xf32>
    %49 = arith.addf %45, %48 : vector<8x1xf32>
    %50 = math.rsqrt %49 : vector<8x1xf32>
    %51 = vector.broadcast %50 : vector<8x1xf32> to vector<8x32xf32>
    %52 = arith.mulf %47, %51 : vector<8x32xf32>
    %53 = vector.broadcast %31 : vector<1x32xf32> to vector<8x32xf32>
    %54 = arith.mulf %52, %53 : vector<8x32xf32>
    %55 = vector.broadcast %32 : vector<1x32xf32> to vector<8x32xf32>
    %56 = arith.addf %54, %55 : vector<8x32xf32>
    %c0_30 = arith.constant 0 : index
    %c0_31 = arith.constant 0 : index
    %57 = vector.load %arg11[%c0_30, %c0_31] : memref<8x32xf32, #tpu.memory_space<vmem>>, vector<8x32xf32>
    tpu.vector_store %arg11[%c0_30, %c0_31], %56 {strides = array<i32>} : memref<8x32xf32, #tpu.memory_space<vmem>>, vector<8x32xf32>,
    return
  }
  func.func @transform_0(%arg0: i32) -> (i32, i32) {
    %c0_i32 = arith.constant 0 : i32
    %c0_i32_0 = arith.constant 0 : i32
    return %arg0, %c0_i32 : i32, i32
  }
  func.func @transform_1(%arg0: i32) -> (i32, i32) {
    %c0_i32 = arith.constant 0 : i32
    %c0_i32_0 = arith.constant 0 : i32
    return %arg0, %c0_i32 : i32, i32
  }
  func.func @transform_2(%arg0: i32) -> (i32, i32) {
    %c0_i32 = arith.constant 0 : i32
    %c0_i32_0 = arith.constant 0 : i32
    %c0_i32_1 = arith.constant 0 : i32
    return %c0_i32, %c0_i32_0 : i32, i32
  }
  func.func @transform_3(%arg0: i32) -> (i32, i32) {
    %c0_i32 = arith.constant 0 : i32
    %c0_i32_0 = arith.constant 0 : i32
    %c0_i32_1 = arith.constant 0 : i32
    return %c0_i32, %c0_i32_0 : i32, i32
  }
  func.func @transform_4(%arg0: i32) -> (i32, i32) {
    %c0_i32 = arith.constant 0 : i32
    %c0_i32_0 = arith.constant 0 : i32
    %c0_i32_1 = arith.constant 0 : i32
    return %c0_i32, %c0_i32_0 : i32, i32
  }
  func.func @transform_5(%arg0: i32) -> (i32, i32) {
    %c0_i32 = arith.constant 0 : i32
    %c0_i32_0 = arith.constant 0 : i32
    %c0_i32_1 = arith.constant 0 : i32
    return %c0_i32, %c0_i32_0 : i32, i32
  }
  func.func @transform_6(%arg0: i32) -> (i32, i32) {
    %c0_i32 = arith.constant 0 : i32
    %c0_i32_0 = arith.constant 0 : i32
    %c0_i32_1 = arith.constant 0 : i32
    return %c0_i32, %c0_i32_0 : i32, i32
  }
  func.func @transform_7(%arg0: i32) -> (i32, i32) {
    %c0_i32 = arith.constant 0 : i32
    %c0_i32_0 = arith.constant 0 : i32
    %c0_i32_1 = arith.constant 0 : i32
    return %c0_i32, %c0_i32_0 : i32, i32
  }
  func.func @transform_8(%arg0: i32) -> (i32, i32) {
    %c0_i32 = arith.constant 0 : i32
    %c0_i32_0 = arith.constant 0 : i32
    %c0_i32_1 = arith.constant 0 : i32
    return %c0_i32, %c0_i32_0 : i32, i32
  }
  func.func @transform_9(%arg0: i32) -> (i32, i32) {
    %c0_i32 = arith.constant 0 : i32
    %c0_i32_0 = arith.constant 0 : i32
    %c0_i32_1 = arith.constant 0 : i32
    return %c0_i32, %c0_i32_0 : i32, i32
  }
  func.func @transform_10(%arg0: i32) -> (i32, i32) {
    %c0_i32 = arith.constant 0 : i32
    %c0_i32_0 = arith.constant 0 : i32
    return %arg0, %c0_i32 : i32, i32
  }
}

module attributes {stable_mosaic.version = 11 : i64} {
  func.func @_dfine_gate_kernel_split(%arg0: i32, %arg1: memref<8x32xf32, #tpu.memory_space<vmem>>, %arg2: memref<8x32xf32, #tpu.memory_space<vmem>>, %arg3: memref<32x32xf32, #tpu.memory_space<vmem>>, %arg4: memref<32x32xf32, #tpu.memory_space<vmem>>, %arg5: memref<32x32xf32, #tpu.memory_space<vmem>>, %arg6: memref<32x32xf32, #tpu.memory_space<vmem>>, %arg7: memref<1x32xf32, #tpu.memory_space<vmem>>, %arg8: memref<1x32xf32, #tpu.memory_space<vmem>>, %arg9: memref<1x32xf32, #tpu.memory_space<vmem>>, %arg10: memref<1x32xf32, #tpu.memory_space<vmem>>, %arg11: memref<8x32xf32, #tpu.memory_space<vmem>>) attributes {dimension_semantics = [#tpu.dimension_semantics<parallel>], iteration_bounds = array<i64: 2>, scalar_prefetch = 0 : i64, scratch_operands = 0 : i64, tpu.core_type = #tpu.core_type<tc>, window_params = [{transform_indices = @transform_0, window_bounds = array<i64: 8, 32>}, {transform_indices = @transform_1, window_bounds = array<i64: 8, 32>}, {pipeline_mode = #tpu.pipeline_mode<synchronous>, transform_indices = @transform_2, window_bounds = array<i64: 32, 32>}, {pipeline_mode = #tpu.pipeline_mode<synchronous>, transform_indices = @transform_3, window_bounds = array<i64: 32, 32>}, {pipeline_mode = #tpu.pipeline_mode<synchronous>, transform_indices = @transform_4, window_bounds = array<i64: 32, 32>}, {pipeline_mode = #tpu.pipeline_mode<synchronous>, transform_indices = @transform_5, window_bounds = array<i64: 32, 32>}, {pipeline_mode = #tpu.pipeline_mode<synchronous>, transform_indices = @transform_6, window_bounds = array<i64: 1, 32>}, {pipeline_mode = #tpu.pipeline_mode<synchronous>, transform_indices = @transform_7, window_bounds = array<i64: 1, 32>}, {pipeline_mode = #tpu.pipeline_mode<synchronous>, transform_indices = @transform_8, window_bounds = array<i64: 1, 32>}, {pipeline_mode = #tpu.pipeline_mode<synchronous>, transform_indices = @transform_9, window_bounds = array<i64: 1, 32>}, {transform_indices = @transform_10, window_bounds = array<i64: 8, 32>}]} {
    %c0 = arith.constant 0 : index
    %c0_0 = arith.constant 0 : index
    %0 = vector.load %arg1[%c0, %c0_0] : memref<8x32xf32, #tpu.memory_space<vmem>>, vector<8x32xf32>
    %c0_1 = arith.constant 0 : index
    %c0_2 = arith.constant 0 : index
    %1 = vector.load %arg2[%c0_1, %c0_2] : memref<8x32xf32, #tpu.memory_space<vmem>>, vector<8x32xf32>
    %c0_3 = arith.constant 0 : index
    %c0_4 = arith.constant 0 : index
    %2 = vector.load %arg3[%c0_3, %c0_4] : memref<32x32xf32, #tpu.memory_space<vmem>>, vector<32x32xf32>
    %cst = arith.constant dense<0.000000e+00> : vector<8x32xf32>
    %3 = tpu.matmul %0, %2, %cst {dimension_numbers = #tpu.dot_dimension_numbers<[1], [0], [0], [1], [0, 0, 1, 1], [], []>} : vector<8x32xf32>, vector<32x32xf32>, vector<8x32xf32> -> vector<8x32xf32>
    %c0_5 = arith.constant 0 : index
    %c0_6 = arith.constant 0 : index
    %4 = vector.load %arg4[%c0_5, %c0_6] : memref<32x32xf32, #tpu.memory_space<vmem>>, vector<32x32xf32>
    %cst_7 = arith.constant dense<0.000000e+00> : vector<8x32xf32>
    %5 = tpu.matmul %1, %4, %cst_7 {dimension_numbers = #tpu.dot_dimension_numbers<[1], [0], [0], [1], [0, 0, 1, 1], [], []>} : vector<8x32xf32>, vector<32x32xf32>, vector<8x32xf32> -> vector<8x32xf32>
    %6 = arith.addf %3, %5 : vector<8x32xf32>
    %c0_8 = arith.constant 0 : index
    %c0_9 = arith.constant 0 : index
    %7 = vector.load %arg7[%c0_8, %c0_9] : memref<1x32xf32, #tpu.memory_space<vmem>>, vector<1x32xf32>
    %8 = vector.broadcast %7 : vector<1x32xf32> to vector<8x32xf32>
    %9 = arith.addf %6, %8 : vector<8x32xf32>
    %c0_10 = arith.constant 0 : index
    %c0_11 = arith.constant 0 : index
    %10 = vector.load %arg5[%c0_10, %c0_11] : memref<32x32xf32, #tpu.memory_space<vmem>>, vector<32x32xf32>
    %cst_12 = arith.constant dense<0.000000e+00> : vector<8x32xf32>
    %11 = tpu.matmul %0, %10, %cst_12 {dimension_numbers = #tpu.dot_dimension_numbers<[1], [0], [0], [1], [0, 0, 1, 1], [], []>} : vector<8x32xf32>, vector<32x32xf32>, vector<8x32xf32> -> vector<8x32xf32>
    %c0_13 = arith.constant 0 : index
    %c0_14 = arith.constant 0 : index
    %12 = vector.load %arg6[%c0_13, %c0_14] : memref<32x32xf32, #tpu.memory_space<vmem>>, vector<32x32xf32>
    %cst_15 = arith.constant dense<0.000000e+00> : vector<8x32xf32>
    %13 = tpu.matmul %1, %12, %cst_15 {dimension_numbers = #tpu.dot_dimension_numbers<[1], [0], [0], [1], [0, 0, 1, 1], [], []>} : vector<8x32xf32>, vector<32x32xf32>, vector<8x32xf32> -> vector<8x32xf32>
    %14 = arith.addf %11, %13 : vector<8x32xf32>
    %c0_16 = arith.constant 0 : index
    %c0_17 = arith.constant 0 : index
    %15 = vector.load %arg8[%c0_16, %c0_17] : memref<1x32xf32, #tpu.memory_space<vmem>>, vector<1x32xf32>
    %16 = vector.broadcast %15 : vector<1x32xf32> to vector<8x32xf32>
    %17 = arith.addf %14, %16 : vector<8x32xf32>
    %18 = arith.negf %9 : vector<8x32xf32>
    %19 = math.exp %18 : vector<8x32xf32>
    %cst_18 = arith.constant 1.000000e+00 : f32
    %20 = vector.broadcast %cst_18 : f32 to vector<8x32xf32>
    %21 = arith.addf %20, %19 : vector<8x32xf32>
    %22 = arith.divf %20, %21 : vector<8x32xf32>
    %23 = arith.negf %17 : vector<8x32xf32>
    %24 = math.exp %23 : vector<8x32xf32>
    %cst_19 = arith.constant 1.000000e+00 : f32
    %25 = vector.broadcast %cst_19 : f32 to vector<8x32xf32>
    %26 = arith.addf %25, %24 : vector<8x32xf32>
    %27 = arith.divf %25, %26 : vector<8x32xf32>
    %28 = arith.mulf %22, %0 : vector<8x32xf32>
    %29 = arith.mulf %27, %1 : vector<8x32xf32>
    %30 = arith.addf %28, %29 : vector<8x32xf32>
    %c0_20 = arith.constant 0 : index
    %c0_21 = arith.constant 0 : index
    %31 = vector.load %arg9[%c0_20, %c0_21] : memref<1x32xf32, #tpu.memory_space<vmem>>, vector<1x32xf32>
    %c0_22 = arith.constant 0 : index
    %c0_23 = arith.constant 0 : index
    %32 = vector.load %arg10[%c0_22, %c0_23] : memref<1x32xf32, #tpu.memory_space<vmem>>, vector<1x32xf32>
    %cst_24 = arith.constant dense<0.000000e+00> : vector<8xf32>
    %33 = vector.multi_reduction <add>, %30, %cst_24 [1] : vector<8x32xf32> to vector<8xf32>
    %34 = vector.shape_cast %33 : vector<8xf32> to vector<8x1xf32>
    %cst_25 = arith.constant 3.200000e+01 : f32
    %35 = vector.broadcast %cst_25 : f32 to vector<8x1xf32>
    %36 = arith.divf %34, %35 : vector<8x1xf32>
    %37 = arith.mulf %30, %30 : vector<8x32xf32>
    %cst_26 = arith.constant dense<0.000000e+00> : vector<8xf32>
    %38 = vector.multi_reduction <add>, %37, %cst_26 [1] : vector<8x32xf32> to vector<8xf32>
    %39 = vector.shape_cast %38 : vector<8xf32> to vector<8x1xf32>
    %cst_27 = arith.constant 3.200000e+01 : f32
    %40 = vector.broadcast %cst_27 : f32 to vector<8x1xf32>
    %41 = arith.divf %39, %40 : vector<8x1xf32>
    %42 = arith.mulf %36, %36 : vector<8x1xf32>
    %43 = arith.subf %41, %42 : vector<8x1xf32>
    %cst_28 = arith.constant 0.000000e+00 : f32
    %44 = vector.broadcast %cst_28 : f32 to vector<8x1xf32>
    %45 = arith.maximumf %43, %44 : vector<8x1xf32>
    %46 = vector.broadcast %36 : vector<8x1xf32> to vector<8x32xf32>
    %47 = arith.subf %30, %46 : vector<8x32xf32>
    %cst_29 = arith.constant 9.99999974E-6 : f32
    %48 = vector.broadcast %cst_29 : f32 to vector<8x1xf32>
    %49 = arith.addf %45, %48 : vector<8x1xf32>
    %50 = math.rsqrt %49 : vector<8x1xf32>
    %51 = vector.broadcast %50 : vector<8x1xf32> to vector<8x32xf32>
    %52 = arith.mulf %47, %51 : vector<8x32xf32>
    %53 = vector.broadcast %31 : vector<1x32xf32> to vector<8x32xf32>
    %54 = arith.mulf %52, %53 : vector<8x32xf32>
    %55 = vector.broadcast %32 : vector<1x32xf32> to vector<8x32xf32>
    %56 = arith.addf %54, %55 : vector<8x32xf32>
    %c0_30 = arith.constant 0 : index
    %c0_31 = arith.constant 0 : index
    %57 = vector.load %arg11[%c0_30, %c0_31] : memref<8x32xf32, #tpu.memory_space<vmem>>, vector<8x32xf32>
    tpu.vector_store %arg11[%c0_30, %c0_31], %56 {strides = array<i32>} : memref<8x32xf32, #tpu.memory_space<vmem>>, vector<8x32xf32>,
    return
  }
  func.func @transform_0(%arg0: i32) -> (i32, i32) {
    %c0_i32 = arith.constant 0 : i32
    %c0_i32_0 = arith.constant 0 : i32
    return %arg0, %c0_i32 : i32, i32
  }
  func.func @transform_1(%arg0: i32) -> (i32, i32) {
    %c0_i32 = arith.constant 0 : i32
    %c0_i32_0 = arith.constant 0 : i32
    return %arg0, %c0_i32 : i32, i32
  }
  func.func @transform_2(%arg0: i32) -> (i32, i32) {
    %c0_i32 = arith.constant 0 : i32
    %c0_i32_0 = arith.constant 0 : i32
    %c0_i32_1 = arith.constant 0 : i32
    return %c0_i32, %c0_i32_0 : i32, i32
  }
  func.func @transform_3(%arg0: i32) -> (i32, i32) {
    %c0_i32 = arith.constant 0 : i32
    %c0_i32_0 = arith.constant 0 : i32
    %c0_i32_1 = arith.constant 0 : i32
    return %c0_i32, %c0_i32_0 : i32, i32
  }
  func.func @transform_4(%arg0: i32) -> (i32, i32) {
    %c0_i32 = arith.constant 0 : i32
    %c0_i32_0 = arith.constant 0 : i32
    %c0_i32_1 = arith.constant 0 : i32
    return %c0_i32, %c0_i32_0 : i32, i32
  }
  func.func @transform_5(%arg0: i32) -> (i32, i32) {
    %c0_i32 = arith.constant 0 : i32
    %c0_i32_0 = arith.constant 0 : i32
    %c0_i32_1 = arith.constant 0 : i32
    return %c0_i32, %c0_i32_0 : i32, i32
  }
  func.func @transform_6(%arg0: i32) -> (i32, i32) {
    %c0_i32 = arith.constant 0 : i32
    %c0_i32_0 = arith.constant 0 : i32
    %c0_i32_1 = arith.constant 0 : i32
    return %c0_i32, %c0_i32_0 : i32, i32
  }
  func.func @transform_7(%arg0: i32) -> (i32, i32) {
    %c0_i32 = arith.constant 0 : i32
    %c0_i32_0 = arith.constant 0 : i32
    %c0_i32_1 = arith.constant 0 : i32
    return %c0_i32, %c0_i32_0 : i32, i32
  }
  func.func @transform_8(%arg0: i32) -> (i32, i32) {
    %c0_i32 = arith.constant 0 : i32
    %c0_i32_0 = arith.constant 0 : i32
    %c0_i32_1 = arith.constant 0 : i32
    return %c0_i32, %c0_i32_0 : i32, i32
  }
  func.func @transform_9(%arg0: i32) -> (i32, i32) {
    %c0_i32 = arith.constant 0 : i32
    %c0_i32_0 = arith.constant 0 : i32
    %c0_i32_1 = arith.constant 0 : i32
    return %c0_i32, %c0_i32_0 : i32, i32
  }
  func.func @transform_10(%arg0: i32) -> (i32, i32) {
    %c0_i32 = arith.constant 0 : i32
    %c0_i32_0 = arith.constant 0 : i32
    return %arg0, %c0_i32 : i32, i32
  }
}

</mosaic_0001>

<llo_original>
// kernel: tpu_custom_call.1
$region0: #{tpu_custom_call.1}
  #allocation0 [shape = 'u32[]', space=smem, size = 0x4, offset = 0x4, fixed_abs, tag = 'smem constant byte address 0x4 - core index']
  #allocation1 [shape = 'u32[72,128]{1,0:T(1,128)}', space=vmem, size = 0x9000, scoped, tag = 'internal scratch']
  %s0 = inlined_call_operand.hbm [shape: f32[16,32], index: 0, kind: input, shape index: {}]
  %s1 = inlined_call_operand.hbm [shape: f32[16,32], index: 1, kind: input, shape index: {}]
  %s2 = inlined_call_operand.hbm [shape: f32[32,32], index: 2, kind: input, shape index: {}]
  %s3 = inlined_call_operand.hbm [shape: f32[32,32], index: 3, kind: input, shape index: {}]
  %s4 = inlined_call_operand.hbm [shape: f32[32,32], index: 4, kind: input, shape index: {}]
  %s5 = inlined_call_operand.hbm [shape: f32[32,32], index: 5, kind: input, shape index: {}]
  %s6 = inlined_call_operand.vmem [shape: f32[1,32], index: 6, kind: input, shape index: {}]
  %s7 = inlined_call_operand.vmem [shape: f32[1,32], index: 7, kind: input, shape index: {}]
  %s8 = inlined_call_operand.vmem [shape: f32[1,32], index: 8, kind: input, shape index: {}]
  %s9 = inlined_call_operand.vmem [shape: f32[1,32], index: 9, kind: input, shape index: {}]
  %s10 = inlined_call_operand.hbm [shape: f32[16,32], index: 10, kind: output, shape index: {}]
  %s11 = sld [smem:[#allocation0]]
  $region97: #{tpu_custom_call.1} parent=0
    _
  %s13 = ssub.s32 1, %s11
  %s14 = scalar_select 0, %s13, %s11
  $region1: #{tpu_custom_call.1} parent=0
    #allocation2 [shape = 'u8[8192]{0}', space=vmem, size = 0x2000, scoped, tag = 'input window, operand 0']
    #allocation3 [shape = 's32[2]{0}', space=sflag, size = 0x8, scoped, tag = 'scoped memory for tpu_custom_call.1']
    #allocation4 [shape = 's32[2]{0}', space=sflag, size = 0x8, scoped, tag = 'scoped memory for tpu_custom_call.1']
    #allocation5 [shape = 'u8[8192]{0}', space=vmem, size = 0x2000, scoped, tag = 'input window, operand 1']
    #allocation6 [shape = 's32[2]{0}', space=sflag, size = 0x8, scoped, tag = 'scoped memory for tpu_custom_call.1']
    #allocation7 [shape = 'u8[16384]{0}', space=vmem, size = 0x4000, scoped, tag = 'input window, operand 2, single buffered']
    #allocation8 [shape = 'u8[16384]{0}', space=vmem, size = 0x4000, scoped, tag = 'input window, operand 3, single buffered']
    #allocation9 [shape = 's32[1]{0}', space=sflag, size = 0x4, scoped, tag = 'scoped memory for tpu_custom_call.1']
    #allocation10 [shape = 'u8[16384]{0}', space=vmem, size = 0x4000, scoped, tag = 'input window, operand 4, single buffered']
    #allocation11 [shape = 'u8[16384]{0}', space=vmem, size = 0x4000, scoped, tag = 'input window, operand 5, single buffered']
    #allocation12 [shape = 's32[1]{0}', space=sflag, size = 0x4, scoped, tag = 'scoped memory for tpu_custom_call.1']
    #allocation13 [shape = 'u8[8192]{0}', space=vmem, size = 0x2000, scoped, tag = 'output window, operand 0']
    %15 = vsyncpa [#allocation3], 0
    %s16 = scalar_lea.sflag [#allocation3], 1
    %17 = vsyncpa %s16, 0
    %18 = vsyncpa [#allocation6], 0
    %s19 = scalar_lea.sflag [#allocation6], 1
    %20 = vsyncpa %s19, 0
    %21 = vsyncpa [#allocation9], 0
    %22 = vsyncpa [#allocation12], 0
    %23 = vsyncpa [#allocation4], 0
    %s24 = scalar_lea.sflag [#allocation4], 1
    %25 = vsyncpa %s24, 0
    loop: start=0, step=1, limit=4
    $region2: #{tpu_custom_call.1} parent=1 // loop_pre_header
      _
    $region3: #{tpu_custom_call.1} parent=1 // loop_header
      %s27 = sphi 0, %s31
      %p28 = scmp.ge.s32.totalorder %s27, 4
      %s37 = sphi 0, %s39
      %s40 = sphi 0, %s37
      %s41 = sphi 0, %s40
      %s57 = sphi 0, %s41
      %s63 = sphi 0, %s65
      %s66 = sphi 0, %s63
      %s67 = sphi 0, %s66
      %s83 = sphi 0, %s67
      %s87 = sphi 0, %s87
      %s89 = sphi 0, %s87
      %s90 = sphi 0, %s89
      %s104 = sphi 0, %s90
      %s108 = sphi 0, %s108
      %s110 = sphi 0, %s108
      %s111 = sphi 0, %s110
      %s125 = sphi 0, %s111
      %s129 = sphi 0, %s129
      %s131 = sphi 0, %s129
      %s132 = sphi 0, %s131
      %s146 = sphi 0, %s132
      %s150 = sphi 0, %s150
      %s152 = sphi 0, %s150
      %s153 = sphi 0, %s152
      %s167 = sphi 0, %s153
      %s171 = sphi 0, %s171
      %s173 = sphi 0, %s171
      %s174 = sphi 0, %s173
      %s188 = sphi 0, %s174
      %s192 = sphi 0, %s192
      %s194 = sphi 0, %s192
      %s195 = sphi 0, %s194
      %s209 = sphi 0, %s195
      %s213 = sphi 0, %s213
      %s215 = sphi 0, %s213
      %s216 = sphi 0, %s215
      %s230 = sphi 0, %s216
      %s234 = sphi 0, %s234
      %s236 = sphi 0, %s234
      %s237 = sphi 0, %s236
      %s251 = sphi 0, %s237
      %s257 = sphi 0, %s259
      %s260 = sphi 0, %s257
      %s261 = sphi 0, %s260
      %s277 = sphi 0, %s261
    $region4: #{tpu_custom_call.1} parent=1 // loop_header_branch
      %30 = sbr.rel (%p28) target = $region8
    $region5: #{tpu_custom_call.1} parent=1 // loop_body
      %s32 = ssub.s32 %s27, 1
      %s33 = ssub.s32 %s27, 2
      %s34 = sadd.s32 %s27, 1
      %s35 = ssub.s32 %s27, %s34
      %p36 = scmp.eq.s32.totalorder %s35, 0
      %s38 = sadd.s32 %s37, 1
      %s39 = scalar_select %p36, %s37, %s38
      %p42 = pneg %p36
      %p43 = scmp.eq.s32.totalorder %s27, 1
      %p44 = por %p42, %p43
      %p45 = scmp.ne.s32.totalorder %s37, %s40
      %p46 = scmp.eq.s32.totalorder %s27, 0
      %p47 = por %p45, %p46
      %p48 = scmp.ne.s32.totalorder %s37, %s40
      %p49 = scmp.eq.s32.totalorder %s32, 1
      %p50 = por %p48, %p49
      %p51 = scmp.ne.s32.totalorder %s40, %s41
      %p52 = scmp.eq.s32.totalorder %s32, 0
      %p53 = por %p51, %p52
      %p54 = scmp.ne.s32.totalorder %s40, %s41
      %p55 = scmp.eq.s32.totalorder %s33, 1
      %p56 = por %p54, %p55
      %p58 = scmp.ne.s32.totalorder %s41, %s57
      %p59 = scmp.eq.s32.totalorder %s33, 0
      %p60 = por %p58, %p59
      %s61 = ssub.s32 %s27, %s34
      %p62 = scmp.eq.s32.totalorder %s61, 0
      %s64 = sadd.s32 %s63, 1
      %s65 = scalar_select %p62, %s63, %s64
      %p68 = pneg %p62
      %p69 = scmp.eq.s32.totalorder %s27, 1
      %p70 = por %p68, %p69
      %p71 = scmp.ne.s32.totalorder %s63, %s66
      %p72 = scmp.eq.s32.totalorder %s27, 0
      %p73 = por %p71, %p72
      %p74 = scmp.ne.s32.totalorder %s63, %s66
      %p75 = scmp.eq.s32.totalorder %s32, 1
      %p76 = por %p74, %p75
      %p77 = scmp.ne.s32.totalorder %s66, %s67
      %p78 = scmp.eq.s32.totalorder %s32, 0
      %p79 = por %p77, %p78
      %p80 = scmp.ne.s32.totalorder %s66, %s67
      %p81 = scmp.eq.s32.totalorder %s33, 1
      %p82 = por %p80, %p81
      %p84 = scmp.ne.s32.totalorder %s67, %s83
      %p85 = scmp.eq.s32.totalorder %s33, 0
      %p86 = por %p84, %p85
      %s88 = sadd.s32 %s87, 1
      %p91 = scmp.eq.s32.totalorder %s27, 1
      %p92 = scmp.ne.s32.totalorder %s87, %s89
      %p93 = scmp.eq.s32.totalorder %s27, 0
      %p94 = por %p92, %p93
      %p95 = scmp.ne.s32.totalorder %s87, %s89
      %p96 = scmp.eq.s32.totalorder %s32, 1
      %p97 = por %p95, %p96
      %p98 = scmp.ne.s32.totalorder %s89, %s90
      %p99 = scmp.eq.s32.totalorder %s32, 0
      %p100 = por %p98, %p99
      %p101 = scmp.ne.s32.totalorder %s89, %s90
      %p102 = scmp.eq.s32.totalorder %s33, 1
      %p103 = por %p101, %p102
      %p105 = scmp.ne.s32.totalorder %s90, %s104
      %p106 = scmp.eq.s32.totalorder %s33, 0
      %p107 = por %p105, %p106
      %s109 = sadd.s32 %s108, 1
      %p112 = scmp.eq.s32.totalorder %s27, 1
      %p113 = scmp.ne.s32.totalorder %s108, %s110
      %p114 = scmp.eq.s32.totalorder %s27, 0
      %p115 = por %p113, %p114
      %p116 = scmp.ne.s32.totalorder %s108, %s110
      %p117 = scmp.eq.s32.totalorder %s32, 1
      %p118 = por %p116, %p117
      %p119 = scmp.ne.s32.totalorder %s110, %s111
      %p120 = scmp.eq.s32.totalorder %s32, 0
      %p121 = por %p119, %p120
      %p122 = scmp.ne.s32.totalorder %s110, %s111
      %p123 = scmp.eq.s32.totalorder %s33, 1
      %p124 = por %p122, %p123
      %p126 = scmp.ne.s32.totalorder %s111, %s125
      %p127 = scmp.eq.s32.totalorder %s33, 0
      %p128 = por %p126, %p127
      %s130 = sadd.s32 %s129, 1
      %p133 = scmp.eq.s32.totalorder %s27, 1
      %p134 = scmp.ne.s32.totalorder %s129, %s131
      %p135 = scmp.eq.s32.totalorder %s27, 0
      %p136 = por %p134, %p135
      %p137 = scmp.ne.s32.totalorder %s129, %s131
      %p138 = scmp.eq.s32.totalorder %s32, 1
      %p139 = por %p137, %p138
      %p140 = scmp.ne.s32.totalorder %s131, %s132
      %p141 = scmp.eq.s32.totalorder %s32, 0
      %p142 = por %p140, %p141
      %p143 = scmp.ne.s32.totalorder %s131, %s132
      %p144 = scmp.eq.s32.totalorder %s33, 1
      %p145 = por %p143, %p144
      %p147 = scmp.ne.s32.totalorder %s132, %s146
      %p148 = scmp.eq.s32.totalorder %s33, 0
      %p149 = por %p147, %p148
      %s151 = sadd.s32 %s150, 1
      %p154 = scmp.eq.s32.totalorder %s27, 1
      %p155 = scmp.ne.s32.totalorder %s150, %s152
      %p156 = scmp.eq.s32.totalorder %s27, 0
      %p157 = por %p155, %p156
      %p158 = scmp.ne.s32.totalorder %s150, %s152
      %p159 = scmp.eq.s32.totalorder %s32, 1
      %p160 = por %p158, %p159
      %p161 = scmp.ne.s32.totalorder %s152, %s153
      %p162 = scmp.eq.s32.totalorder %s32, 0
      %p163 = por %p161, %p162
      %p164 = scmp.ne.s32.totalorder %s152, %s153
      %p165 = scmp.eq.s32.totalorder %s33, 1
      %p166 = por %p164, %p165
      %p168 = scmp.ne.s32.totalorder %s153, %s167
      %p169 = scmp.eq.s32.totalorder %s33, 0
      %p170 = por %p168, %p169
      %s172 = sadd.s32 %s171, 1
      %p175 = scmp.eq.s32.totalorder %s27, 1
      %p176 = scmp.ne.s32.totalorder %s171, %s173
      %p177 = scmp.eq.s32.totalorder %s27, 0
      %p178 = por %p176, %p177
      %p179 = scmp.ne.s32.totalorder %s171, %s173
      %p180 = scmp.eq.s32.totalorder %s32, 1
      %p181 = por %p179, %p180
      %p182 = scmp.ne.s32.totalorder %s173, %s174
      %p183 = scmp.eq.s32.totalorder %s32, 0
      %p184 = por %p182, %p183
      %p185 = scmp.ne.s32.totalorder %s173, %s174
      %p186 = scmp.eq.s32.totalorder %s33, 1
      %p187 = por %p185, %p186
      %p189 = scmp.ne.s32.totalorder %s174, %s188
      %p190 = scmp.eq.s32.totalorder %s33, 0
      %p191 = por %p189, %p190
      %s193 = sadd.s32 %s192, 1
      %p196 = scmp.eq.s32.totalorder %s27, 1
      %p197 = scmp.ne.s32.totalorder %s192, %s194
      %p198 = scmp.eq.s32.totalorder %s27, 0
      %p199 = por %p197, %p198
      %p200 = scmp.ne.s32.totalorder %s192, %s194
      %p201 = scmp.eq.s32.totalorder %s32, 1
      %p202 = por %p200, %p201
      %p203 = scmp.ne.s32.totalorder %s194, %s195
      %p204 = scmp.eq.s32.totalorder %s32, 0
      %p205 = por %p203, %p204
      %p206 = scmp.ne.s32.totalorder %s194, %s195
      %p207 = scmp.eq.s32.totalorder %s33, 1
      %p208 = por %p206, %p207
      %p210 = scmp.ne.s32.totalorder %s195, %s209
      %p211 = scmp.eq.s32.totalorder %s33, 0
      %p212 = por %p210, %p211
      %s214 = sadd.s32 %s213, 1
      %p217 = scmp.eq.s32.totalorder %s27, 1
      %p218 = scmp.ne.s32.totalorder %s213, %s215
      %p219 = scmp.eq.s32.totalorder %s27, 0
      %p220 = por %p218, %p219
      %p221 = scmp.ne.s32.totalorder %s213, %s215
      %p222 = scmp.eq.s32.totalorder %s32, 1
      %p223 = por %p221, %p222
      %p224 = scmp.ne.s32.totalorder %s215, %s216
      %p225 = scmp.eq.s32.totalorder %s32, 0
      %p226 = por %p224, %p225
      %p227 = scmp.ne.s32.totalorder %s215, %s216
      %p228 = scmp.eq.s32.totalorder %s33, 1
      %p229 = por %p227, %p228
      %p231 = scmp.ne.s32.totalorder %s216, %s230
      %p232 = scmp.eq.s32.totalorder %s33, 0
      %p233 = por %p231, %p232
      %s235 = sadd.s32 %s234, 1
      %p238 = scmp.eq.s32.totalorder %s27, 1
      %p239 = scmp.ne.s32.totalorder %s234, %s236
      %p240 = scmp.eq.s32.totalorder %s27, 0
      %p241 = por %p239, %p240
      %p242 = scmp.ne.s32.totalorder %s234, %s236
      %p243 = scmp.eq.s32.totalorder %s32, 1
      %p244 = por %p242, %p243
      %p245 = scmp.ne.s32.totalorder %s236, %s237
      %p246 = scmp.eq.s32.totalorder %s32, 0
      %p247 = por %p245, %p246
      %p248 = scmp.ne.s32.totalorder %s236, %s237
      %p249 = scmp.eq.s32.totalorder %s33, 1
      %p250 = por %p248, %p249
      %p252 = scmp.ne.s32.totalorder %s237, %s251
      %p253 = scmp.eq.s32.totalorder %s33, 0
      %p254 = por %p252, %p253
      %s255 = ssub.s32 %s27, %s34
      %p256 = scmp.eq.s32.totalorder %s255, 0
      %s258 = sadd.s32 %s257, 1
      %s259 = scalar_select %p256, %s257, %s258
      %p262 = pneg %p256
      %p263 = scmp.eq.s32.totalorder %s27, 1
      %p264 = por %p262, %p263
      %p265 = scmp.ne.s32.totalorder %s257, %s260
      %p266 = scmp.eq.s32.totalorder %s27, 0
      %p267 = por %p265, %p266
      %p268 = scmp.ne.s32.totalorder %s257, %s260
      %p269 = scmp.eq.s32.totalorder %s32, 1
      %p270 = por %p268, %p269
      %p271 = scmp.ne.s32.totalorder %s260, %s261
      %p272 = scmp.eq.s32.totalorder %s32, 0
      %p273 = por %p271, %p272
      %p274 = scmp.ne.s32.totalorder %s260, %s261
      %p275 = scmp.eq.s32.totalorder %s33, 1
      %p276 = por %p274, %p275
      %p278 = scmp.ne.s32.totalorder %s261, %s277
      %p279 = scmp.eq.s32.totalorder %s33, 0
      %p280 = por %p278, %p279
      %p281 = scmp.le.s32.totalorder 1, %s27
      %p282 = scmp.lt.s32.totalorder %s27, 3
      %p283 = pnand %p281, %p282
      %p284 = pneg %p283
      // Predicated region
      $region9: #{tpu_custom_call.1} parent=5 // pred_check
        _
      $region10: #{tpu_custom_call.1} parent=5 // pred_check_branch
        %286 = sbr.rel (%p283) target = $region12
      $region11: #{tpu_custom_call.1} parent=5 // pred_region
        %s287 = ssub.s32 %s27, 1
        // Predicated region
        $region13: #{tpu_custom_call.1} parent=11 // pred_check
          %p288 = pneg %p100
        $region14: #{tpu_custom_call.1} parent=11 // pred_check_branch
          %290 = sbr.rel (%p288) target = $region16
        $region15: #{tpu_custom_call.1} parent=11 // pred_region
          %292 = vsyncadd [#allocation6], 0
          %s293 = sshll.u32 %s2, 4
          %s294 = int_to_ptr.hbm [resolvable:$true] %s293
          %s295 = sshll.u32 [#allocation7], 4
          %s296 = int_to_ptr.vmem [resolvable:$true] %s295
          %301 = dma.hbm_to_vmem [thread:$0]  %s294, 512, %s296, [#allocation6], 128, 128, 8
        $region16: #{tpu_custom_call.1} parent=11 // pred_fallthru
          _
        // Predicated region
        $region17: #{tpu_custom_call.1} parent=11 // pred_check
          %p302 = pneg %p121
        $region18: #{tpu_custom_call.1} parent=11 // pred_check_branch
          %304 = sbr.rel (%p302) target = $region20
        $region19: #{tpu_custom_call.1} parent=11 // pred_region
          %306 = vsyncadd [#allocation9], 0
          %s307 = sshll.u32 %s3, 4
          %s308 = int_to_ptr.hbm [resolvable:$true] %s307
          %s309 = sshll.u32 [#allocation8], 4
          %s310 = int_to_ptr.vmem [resolvable:$true] %s309
          %315 = dma.hbm_to_vmem [thread:$0]  %s308, 512, %s310, [#allocation9], 128, 128, 8
        $region20: #{tpu_custom_call.1} parent=11 // pred_fallthru
          _
        // Predicated region
        $region21: #{tpu_custom_call.1} parent=11 // pred_check
          %p316 = pneg %p142
        $region22: #{tpu_custom_call.1} parent=11 // pred_check_branch
          %318 = sbr.rel (%p316) target = $region24
        $region23: #{tpu_custom_call.1} parent=11 // pred_region
          %320 = vsyncadd [#allocation9], 0
          %s321 = sshll.u32 %s4, 4
          %s322 = int_to_ptr.hbm [resolvable:$true] %s321
          %s323 = sshll.u32 [#allocation10], 4
          %s324 = int_to_ptr.vmem [resolvable:$true] %s323
          %329 = dma.hbm_to_vmem [thread:$0]  %s322, 512, %s324, [#allocation9], 128, 128, 8
        $region24: #{tpu_custom_call.1} parent=11 // pred_fallthru
          _
        // Predicated region
        $region25: #{tpu_custom_call.1} parent=11 // pred_check
          %p330 = pneg %p163
        $region26: #{tpu_custom_call.1} parent=11 // pred_check_branch
          %332 = sbr.rel (%p330) target = $region28
        $region27: #{tpu_custom_call.1} parent=11 // pred_region
          %334 = vsyncadd [#allocation12], 0
          %s335 = sshll.u32 %s5, 4
          %s336 = int_to_ptr.hbm [resolvable:$true] %s335
          %s337 = sshll.u32 [#allocation11], 4
          %s338 = int_to_ptr.vmem [resolvable:$true] %s337
          %343 = dma.hbm_to_vmem [thread:$0]  %s336, 512, %s338, [#allocation12], 128, 128, 8
        $region28: #{tpu_custom_call.1} parent=11 // pred_fallthru
          _
        // Predicated region
        $region29: #{tpu_custom_call.1} parent=11 // pred_check
          %p344 = pneg %p184
        $region30: #{tpu_custom_call.1} parent=11 // pred_check_branch
          %346 = sbr.rel (%p344) target = $region32
        $region31: #{tpu_custom_call.1} parent=11 // pred_region
          _
        $region32: #{tpu_custom_call.1} parent=11 // pred_fallthru
          _
        // Predicated region
        $region33: #{tpu_custom_call.1} parent=11 // pred_check
          %p347 = pneg %p205
        $region34: #{tpu_custom_call.1} parent=11 // pred_check_branch
          %349 = sbr.rel (%p347) target = $region36
        $region35: #{tpu_custom_call.1} parent=11 // pred_region
          _
        $region36: #{tpu_custom_call.1} parent=11 // pred_fallthru
          _
        // Predicated region
        $region37: #{tpu_custom_call.1} parent=11 // pred_check
          %p350 = pneg %p226
        $region38: #{tpu_custom_call.1} parent=11 // pred_check_branch
          %352 = sbr.rel (%p350) target = $region40
        $region39: #{tpu_custom_call.1} parent=11 // pred_region
          _
        $region40: #{tpu_custom_call.1} parent=11 // pred_fallthru
          _
        // Predicated region
        $region41: #{tpu_custom_call.1} parent=11 // pred_check
          %p353 = pneg %p247
        $region42: #{tpu_custom_call.1} parent=11 // pred_check_branch
          %355 = sbr.rel (%p353) target = $region44
        $region43: #{tpu_custom_call.1} parent=11 // pred_region
          _
        $region44: #{tpu_custom_call.1} parent=11 // pred_fallthru
          _
      $region12: #{tpu_custom_call.1} parent=5 // pred_fallthru
        _
      %p356 = scmp.lt.s32.totalorder %s27, 2
      // Predicated region
      $region45: #{tpu_custom_call.1} parent=5 // pred_check
        %p357 = pneg %p356
      $region46: #{tpu_custom_call.1} parent=5 // pred_check_branch
        %359 = sbr.rel (%p357) target = $region48
      $region47: #{tpu_custom_call.1} parent=5 // pred_region
        // Predicated region
        $region49: #{tpu_custom_call.1} parent=47 // pred_check
          %p360 = pneg %p47
        $region50: #{tpu_custom_call.1} parent=47 // pred_check_branch
          %362 = sbr.rel (%p360) target = $region52
        $region51: #{tpu_custom_call.1} parent=47 // pred_region
          %s363 = sand.u32 %s37, 1
          %s364 = scalar_lea.sflag [#allocation3], %s363
          %s365 = sand.u32 %s37, 1
          %s366 = smul.addr %s365, 8
          %s367 = scalar_lea.vmem [#allocation2], %s366
          %369 = vsyncadd %s364, 0
          %s370 = smul.addr %s27, 8
          %s371 = scalar_lea.hbm %s0, %s370
          %s373 = sshll.u32 %s371, 4
          %s374 = int_to_ptr.hbm [resolvable:$true] %s373
          %s375 = sshll.u32 %s367, 4
          %s376 = int_to_ptr.vmem [resolvable:$true] %s375
          %378 = dma.hbm_to_vmem [thread:$0]  %s374, 128, %s376, %s364
        $region52: #{tpu_custom_call.1} parent=47 // pred_fallthru
          _
        // Predicated region
        $region53: #{tpu_custom_call.1} parent=47 // pred_check
          %p379 = pneg %p73
        $region54: #{tpu_custom_call.1} parent=47 // pred_check_branch
          %381 = sbr.rel (%p379) target = $region56
        $region55: #{tpu_custom_call.1} parent=47 // pred_region
          %s382 = sand.u32 %s27, 1
          %s383 = scalar_lea.sflag [#allocation6], %s382
          %s384 = sand.u32 %s63, 1
          %s385 = smul.addr %s384, 8
          %s386 = scalar_lea.vmem [#allocation5], %s385
          %388 = vsyncadd %s383, 0
          %s389 = smul.addr %s27, 8
          %s390 = scalar_lea.hbm %s1, %s389
          %s392 = sshll.u32 %s390, 4
          %s393 = int_to_ptr.hbm [resolvable:$true] %s392
          %s394 = sshll.u32 %s386, 4
          %s395 = int_to_ptr.vmem [resolvable:$true] %s394
          %397 = dma.hbm_to_vmem [thread:$0]  %s393, 128, %s395, %s383
        $region56: #{tpu_custom_call.1} parent=47 // pred_fallthru
          _
      $region48: #{tpu_custom_call.1} parent=5 // pred_fallthru
        _
      %p398 = scmp.le.s32.totalorder 1, %s27
      %p399 = scmp.lt.s32.totalorder %s27, 3
      %p400 = pnand %p398, %p399
      %p401 = pneg %p400
      // Predicated region
      $region57: #{tpu_custom_call.1} parent=5 // pred_check
        _
      $region58: #{tpu_custom_call.1} parent=5 // pred_check_branch
        %403 = sbr.rel (%p400) target = $region60
      $region59: #{tpu_custom_call.1} parent=5 // pred_region
        %s404 = ssub.s32 %s27, 1
        %s405 = sand.u32 %s40, 1
        %s406 = scalar_lea.sflag [#allocation3], %s405
        %s407 = sand.u32 %s40, 1
        %s408 = smul.addr %s407, 8
        %s409 = scalar_lea.vmem [#allocation2], %s408
        // Predicated region
        $region61: #{tpu_custom_call.1} parent=59 // pred_check
          %p410 = pneg %p53
        $region62: #{tpu_custom_call.1} parent=59 // pred_check_branch
          %412 = sbr.rel (%p410) target = $region64
        $region63: #{tpu_custom_call.1} parent=59 // pred_region
          %414 = dma.done %s406, 128
        $region64: #{tpu_custom_call.1} parent=59 // pred_fallthru
          _
        %s415 = sand.u32 %s32, 1
        %s416 = scalar_lea.sflag [#allocation6], %s415
        %s417 = sand.u32 %s66, 1
        %s418 = smul.addr %s417, 8
        %s419 = scalar_lea.vmem [#allocation5], %s418
        // Predicated region
        $region65: #{tpu_custom_call.1} parent=59 // pred_check
          %p420 = pneg %p79
        $region66: #{tpu_custom_call.1} parent=59 // pred_check_branch
          %422 = sbr.rel (%p420) target = $region68
        $region67: #{tpu_custom_call.1} parent=59 // pred_region
          %424 = dma.done %s416, 128
        $region68: #{tpu_custom_call.1} parent=59 // pred_fallthru
          _
        // Predicated region
        $region69: #{tpu_custom_call.1} parent=59 // pred_check
          %p425 = pneg %p100
        $region70: #{tpu_custom_call.1} parent=59 // pred_check_branch
          %427 = sbr.rel (%p425) target = $region72
        $region71: #{tpu_custom_call.1} parent=59 // pred_region
          %429 = dma.done [#allocation6], 512
        $region72: #{tpu_custom_call.1} parent=59 // pred_fallthru
          _
        // Predicated region
        $region73: #{tpu_custom_call.1} parent=59 // pred_check
          %p430 = pneg %p121
        $region74: #{tpu_custom_call.1} parent=59 // pred_check_branch
          %432 = sbr.rel (%p430) target = $region76
        $region75: #{tpu_custom_call.1} parent=59 // pred_region
          %434 = dma.done [#allocation9], 512
        $region76: #{tpu_custom_call.1} parent=59 // pred_fallthru
          _
        // Predicated region
        $region77: #{tpu_custom_call.1} parent=59 // pred_check
          %p435 = pneg %p142
        $region78: #{tpu_custom_call.1} parent=59 // pred_check_branch
          %437 = sbr.rel (%p435) target = $region80
        $region79: #{tpu_custom_call.1} parent=59 // pred_region
          %439 = dma.done [#allocation9], 512
        $region80: #{tpu_custom_call.1} parent=59 // pred_fallthru
          _
        // Predicated region
        $region81: #{tpu_custom_call.1} parent=59 // pred_check
          %p440 = pneg %p163
        $region82: #{tpu_custom_call.1} parent=59 // pred_check_branch
          %442 = sbr.rel (%p440) target = $region84
        $region83: #{tpu_custom_call.1} parent=59 // pred_region
          %444 = dma.done [#allocation12], 512
        $region84: #{tpu_custom_call.1} parent=59 // pred_fallthru
          _
        %s445 = sand.u32 %s40, 1
        %s446 = scalar_lea.sflag [#allocation3], %s445
        %s447 = sand.u32 %s40, 1
        %s448 = smul.addr %s447, 8
        %s449 = scalar_lea.vmem [#allocation2], %s448
        %p450 = pneg %p53
        %p451 = pneg %p50
        %s452 = sand.u32 %s32, 1
        %s453 = scalar_lea.sflag [#allocation6], %s452
        %s454 = sand.u32 %s66, 1
        %s455 = smul.addr %s454, 8
        %s456 = scalar_lea.vmem [#allocation5], %s455
        %p457 = pneg %p79
        %p458 = pneg %p76
        %p459 = pneg %p100
        %p460 = pneg %p97
        %p461 = pneg %p121
        %p462 = pneg %p118
        %p463 = pneg %p142
        %p464 = pneg %p139
        %p465 = pneg %p163
        %p466 = pneg %p160
        %p467 = pneg %p184
        %p468 = pneg %p181
        %p469 = pneg %p205
        %p470 = pneg %p202
        %p471 = pneg %p226
        %p472 = pneg %p223
        %p473 = pneg %p247
        %p474 = pneg %p244
        %p475 = pneg %p273
        %p476 = pneg %p270
        %s477 = sand.u32 %s260, 1
        %s478 = scalar_lea.sflag [#allocation4], %s477
        %s479 = sand.u32 %s260, 1
        %s480 = smul.addr %s479, 8
        %s481 = scalar_lea.vmem [#allocation13], %s480
        %v482 = vld [vmem:[%s409] sm:$0xff]
        %v483 = vld [vmem:[%s419] sm:$0xff]
        %v484 = vld [vmem:[#allocation7] sm:$0xff]
        %v485 = vld [vmem:[#allocation7 + $0x8] sm:$0xff]
        %v486 = vld [vmem:[#allocation7 + $0x10] sm:$0xff]
        %v487 = vld [vmem:[#allocation7 + $0x18] sm:$0xff]
        %v488 = vld [vmem:[#allocation8] sm:$0xff]
        %v489 = vld [vmem:[#allocation8 + $0x8] sm:$0xff]
        %v490 = vld [vmem:[#allocation8 + $0x10] sm:$0xff]
        %v491 = vld [vmem:[#allocation8 + $0x18] sm:$0xff]
        %vm492 = vcmask 261120
        %v494 = vsel %vm492, %v483, 0
        %496 = vmatpush.msra.mxu0 0.0
        %497 = vmatpush.msra.mxu0 0.0
        %498 = vmatpush.msra.mxu0 0.0
        %499 = vmatpush.msra.mxu0 0.0
        %500 = vmatpush.msra.mxu0 0.0
        %501 = vmatpush.msra.mxu0 0.0
        %502 = vmatpush.msra.mxu0 0.0
        %503 = vmatpush.msra.mxu0 0.0
        %504 = vmatpush.msra.mxu0 0.0
        %505 = vmatpush.msra.mxu0 0.0
        %506 = vmatpush.msra.mxu0 0.0
        %507 = vmatpush.msra.mxu0 0.0
        %508 = vmatpush.msra.mxu0 %v491
        %509 = vmatpush.msra.mxu0 %v490
        %510 = vmatpush.msra.mxu0 %v489
        %511 = vmatpush.msra.mxu0 %v488
        %512 = vmatmul.f32.gmra.mxu0 %v494
        %v513 = vpop.f32.mrf.mxu0
        %v514 = vadd.f32 0.0, %v513
        %515 = vdwg.mxu0
        %v517 = vsel %vm492, %v482, 0
        %519 = vmatpush.msra.mxu0 0.0
        %520 = vmatpush.msra.mxu0 0.0
        %521 = vmatpush.msra.mxu0 0.0
        %522 = vmatpush.msra.mxu0 0.0
        %523 = vmatpush.msra.mxu0 0.0
        %524 = vmatpush.msra.mxu0 0.0
        %525 = vmatpush.msra.mxu0 0.0
        %526 = vmatpush.msra.mxu0 0.0
        %527 = vmatpush.msra.mxu0 0.0
        %528 = vmatpush.msra.mxu0 0.0
        %529 = vmatpush.msra.mxu0 0.0
        %530 = vmatpush.msra.mxu0 0.0
        %531 = vmatpush.msra.mxu0 %v487
        %532 = vmatpush.msra.mxu0 %v486
        %533 = vmatpush.msra.mxu0 %v485
        %534 = vmatpush.msra.mxu0 %v484
        %535 = vmatmul.f32.gmra.mxu0 %v517
        %v536 = vpop.f32.mrf.mxu0
        %v537 = vadd.f32 %v514, %v536
        %538 = vdwg.mxu0
        %v539 = vld [vmem:[%s6] sm:$0x1]
        %v541 = vperm.slane %v539, 0
        %v543 = vadd.f32 %v537, %v541
        %v544 = vld [vmem:[#allocation10] sm:$0xff]
        %v545 = vld [vmem:[#allocation10 + $0x8] sm:$0xff]
        %v546 = vld [vmem:[#allocation10 + $0x10] sm:$0xff]
        %v547 = vld [vmem:[#allocation10 + $0x18] sm:$0xff]
        %v548 = vld [vmem:[#allocation11] sm:$0xff]
        %v549 = vld [vmem:[#allocation11 + $0x8] sm:$0xff]
        %v550 = vld [vmem:[#allocation11 + $0x10] sm:$0xff]
        %v551 = vld [vmem:[#allocation11 + $0x18] sm:$0xff]
        %552 = vmatpush.msra.mxu0 0.0
        %553 = vmatpush.msra.mxu0 0.0
        %554 = vmatpush.msra.mxu0 0.0
        %555 = vmatpush.msra.mxu0 0.0
        %556 = vmatpush.msra.mxu0 0.0
        %557 = vmatpush.msra.mxu0 0.0
        %558 = vmatpush.msra.mxu0 0.0
        %559 = vmatpush.msra.mxu0 0.0
        %560 = vmatpush.msra.mxu0 0.0
        %561 = vmatpush.msra.mxu0 0.0
        %562 = vmatpush.msra.mxu0 0.0
        %563 = vmatpush.msra.mxu0 0.0
        %564 = vmatpush.msra.mxu0 %v551
        %565 = vmatpush.msra.mxu0 %v550
        %566 = vmatpush.msra.mxu0 %v549
        %567 = vmatpush.msra.mxu0 %v548
        %568 = vmatmul.f32.gmra.mxu0 %v494
        %v569 = vpop.f32.mrf.mxu0
        %v570 = vadd.f32 0.0, %v569
        %571 = vdwg.mxu0
        %572 = vmatpush.msra.mxu0 0.0
        %573 = vmatpush.msra.mxu0 0.0
        %574 = vmatpush.msra.mxu0 0.0
        %575 = vmatpush.msra.mxu0 0.0
        %576 = vmatpush.msra.mxu0 0.0
        %577 = vmatpush.msra.mxu0 0.0
        %578 = vmatpush.msra.mxu0 0.0
        %579 = vmatpush.msra.mxu0 0.0
        %580 = vmatpush.msra.mxu0 0.0
        %581 = vmatpush.msra.mxu0 0.0
        %582 = vmatpush.msra.mxu0 0.0
        %583 = vmatpush.msra.mxu0 0.0
        %584 = vmatpush.msra.mxu0 %v547
        %585 = vmatpush.msra.mxu0 %v546
        %586 = vmatpush.msra.mxu0 %v545
        %587 = vmatpush.msra.mxu0 %v544
        %588 = vmatmul.f32.gmra.mxu0 %v517
        %v589 = vpop.f32.mrf.mxu0
        %v590 = vadd.f32 %v570, %v589
        %591 = vdwg.mxu0
        %v592 = vld [vmem:[%s7] sm:$0x1]
        %v594 = vperm.slane %v592, 0
        %v596 = vadd.f32 %v590, %v594
        %v597 = vxor.u32 %v543, 2147483648
        %v598 = vmul.f32 %v597, 1.442695
        %v599 = vpow.pop %v598
        %v600 = vadd.f32 %v599, 1.0
        %v601 = vrcp.pop %v600
        %v602 = vmul.f32 %v600, %v601
        %v603 = vsub.f32 1.0, %v602
        %v604 = vmul.f32 %v601, %v603
        %v605 = vadd.f32 %v601, %v604
        %vm606 = vweird.f32 %v600
        %vm607 = vweird.f32 %v601
        %vm608 = vmor %vm606, %vm607
        %v609 = vsel %vm608, %v601, %v605
        %v610 = vand.u32 2147483647, %v600
        %vm611 = vcmp.eq.f32.partialorder %v610, 8.507059e+37
        %v612 = vand.u32 %v600, 2147483648
        %v613 = vor.u32 1.1754944e-38, %v612
        %v614 = vsel %vm611, %v613, %v609
        %v615 = vmul.f32 1.0, %v614
        %v616 = vxor.u32 %v596, 2147483648
        %v617 = vmul.f32 %v616, 1.442695
        %v618 = vpow.pop %v617
        %v619 = vadd.f32 %v618, 1.0
        %v620 = vrcp.pop %v619
        %v621 = vmul.f32 %v619, %v620
        %v622 = vsub.f32 1.0, %v621
        %v623 = vmul.f32 %v620, %v622
        %v624 = vadd.f32 %v620, %v623
        %vm625 = vweird.f32 %v619
        %vm626 = vweird.f32 %v620
        %vm627 = vmor %vm625, %vm626
        %v628 = vsel %vm627, %v620, %v624
        %v629 = vand.u32 2147483647, %v619
        %vm630 = vcmp.eq.f32.partialorder %v629, 8.507059e+37
        %v631 = vand.u32 %v619, 2147483648
        %v632 = vor.u32 1.1754944e-38, %v631
        %v633 = vsel %vm630, %v632, %v628
        %v634 = vmul.f32 1.0, %v633
        %v635 = vmul.f32 %v615, %v482
        %v636 = vmul.f32 %v634, %v483
        %v637 = vadd.f32 %v635, %v636
        %v638 = vld [vmem:[%s8] sm:$0x1]
        %v639 = vld [vmem:[%s9] sm:$0x1]
        %v640 = vsel %vm492, %v637, 0.0
        %641 = vadd.xlane.f32.xlu0 %v640
        %v642 = vpop.xlane.xlu0 %641
        %v643 = vrcp.pop 32.0
        %v644 = vmul.f32 32.0, %v643
        %v645 = vsub.f32 1.0, %v644
        %v646 = vmul.f32 %v643, %v645
        %v647 = vadd.f32 %v643, %v646
        %vm648 = vweird.f32 %v643
        %v649 = vsel %vm648, %v643, %v647
        %v650 = vmul.f32 %v642, %v649
        %v651 = vmul.f32 %v637, %v637
        %v652 = vsel %vm492, %v651, 0.0
        %653 = vadd.xlane.f32.xlu0 %v652
        %v654 = vpop.xlane.xlu0 %653
        %v655 = vmul.f32 %v654, %v649
        %v656 = vmul.f32 %v650, %v650
        %v657 = vsub.f32 %v655, %v656
        %v658 = vmax.f32 %v657, 0.0
        %v659 = vsub.f32 %v637, %v650
        %v660 = vadd.f32 %v658, 1e-05
        %v661 = vrsqrt.pop %v660
        %v662 = vmul.f32 %v661, %v660
        %v663 = vmul.f32 %v662, %v661
        %v664 = vmul.f32 0.5, %v663
        %v665 = vsub.f32 1.5, %v664
        %v666 = vmul.f32 %v661, %v665
        %vm667 = vweird.f32 %v660
        %vm668 = vweird.f32 %v661
        %vm669 = vmor %vm667, %vm668
        %v670 = vsel %vm669, %v661, %v666
        %v671 = vmul.f32 %v659, %v670
        %v673 = vperm.slane %v638, 0
        %v675 = vmul.f32 %v671, %v673
        %v677 = vperm.slane %v639, 0
        %v679 = vadd.f32 %v675, %v677
        %680 = vst.msk [vmem:[%s481] sm:$0xff] %vm492, %v679
        %s681 = sand.u32 %s260, 1
        %s682 = scalar_lea.sflag [#allocation4], %s681
        %s683 = sand.u32 %s260, 1
        %s684 = smul.addr %s683, 8
        %s685 = scalar_lea.vmem [#allocation13], %s684
        // Predicated region
        $region85: #{tpu_custom_call.1} parent=59 // pred_check
          %p686 = pneg %p270
        $region86: #{tpu_custom_call.1} parent=59 // pred_check_branch
          %688 = sbr.rel (%p686) target = $region88
        $region87: #{tpu_custom_call.1} parent=59 // pred_region
          %690 = vsyncadd %s682, 0
          %s691 = smul.addr %s32, 8
          %s692 = scalar_lea.hbm %s10, %s691
          %s694 = sshll.u32 %s685, 4
          %s695 = int_to_ptr.vmem [resolvable:$true] %s694
          %s696 = sshll.u32 %s692, 4
          %s697 = int_to_ptr.hbm [resolvable:$true] %s696
          %699 = dma.vmem_to_hbm [thread:$0]  %s695, 128, %s697, %s682
        $region88: #{tpu_custom_call.1} parent=59 // pred_fallthru
          _
      $region60: #{tpu_custom_call.1} parent=5 // pred_fallthru
        _
      %p700 = scmp.le.s32.totalorder 2, %s27
      // Predicated region
      $region89: #{tpu_custom_call.1} parent=5 // pred_check
        %p701 = pneg %p700
      $region90: #{tpu_custom_call.1} parent=5 // pred_check_branch
        %703 = sbr.rel (%p701) target = $region92
      $region91: #{tpu_custom_call.1} parent=5 // pred_region
        %s704 = ssub.s32 %s27, 2
        // Predicated region
        $region93: #{tpu_custom_call.1} parent=91 // pred_check
          %p705 = pneg %p276
        $region94: #{tpu_custom_call.1} parent=91 // pred_check_branch
          %707 = sbr.rel (%p705) target = $region96
        $region95: #{tpu_custom_call.1} parent=91 // pred_region
          %s708 = sand.u32 %s261, 1
          %s709 = scalar_lea.sflag [#allocation4], %s708
          %s710 = sand.u32 %s261, 1
          %s711 = smul.addr %s710, 8
          %s712 = scalar_lea.vmem [#allocation13], %s711
          %714 = dma.done %s709, 128
        $region96: #{tpu_custom_call.1} parent=91 // pred_fallthru
          _
      $region92: #{tpu_custom_call.1} parent=5 // pred_fallthru
        _
    $region6: #{tpu_custom_call.1} parent=1 // loop_footer
      %s31 = sadd.s32 1, %s27
    $region7: #{tpu_custom_call.1} parent=1 // loop_footer_branch
      %26 = sbr.rel target = $region3
    $region8: #{tpu_custom_call.1} parent=1 // loop_exit
      _
    %715 = vsyncpa [#allocation3], 1
    %s716 = scalar_lea.sflag [#allocation3], 1
    %717 = vsyncpa %s716, 1
    %718 = vsyncpa [#allocation6], 1
    %s719 = scalar_lea.sflag [#allocation6], 1
    %720 = vsyncpa %s719, 1
    %721 = vsyncpa [#allocation9], 1
    %722 = vsyncpa [#allocation12], 1
    %723 = vsyncpa [#allocation4], 1
    %s724 = scalar_lea.sflag [#allocation4], 1
    %725 = vsyncpa %s724, 1

// kernel: tpu_custom_call.1
$region0: #{tpu_custom_call.1}
  #allocation0 [shape = 'u32[]', space=smem, size = 0x4, offset = 0x4, fixed_abs, tag = 'smem constant byte address 0x4 - core index']
  #allocation1 [shape = 'u32[72,128]{1,0:T(1,128)}', space=vmem, size = 0x9000, scoped, tag = 'internal scratch']
  %s0 = inlined_call_operand.hbm [shape: f32[16,32], index: 0, kind: input, shape index: {}]
  %s1 = inlined_call_operand.hbm [shape: f32[16,32], index: 1, kind: input, shape index: {}]
  %s2 = inlined_call_operand.hbm [shape: f32[32,32], index: 2, kind: input, shape index: {}]
  %s3 = inlined_call_operand.hbm [shape: f32[32,32], index: 3, kind: input, shape index: {}]
  %s4 = inlined_call_operand.hbm [shape: f32[32,32], index: 4, kind: input, shape index: {}]
  %s5 = inlined_call_operand.hbm [shape: f32[32,32], index: 5, kind: input, shape index: {}]
  %s6 = inlined_call_operand.vmem [shape: f32[1,32], index: 6, kind: input, shape index: {}]
  %s7 = inlined_call_operand.vmem [shape: f32[1,32], index: 7, kind: input, shape index: {}]
  %s8 = inlined_call_operand.vmem [shape: f32[1,32], index: 8, kind: input, shape index: {}]
  %s9 = inlined_call_operand.vmem [shape: f32[1,32], index: 9, kind: input, shape index: {}]
  %s10 = inlined_call_operand.hbm [shape: f32[16,32], index: 10, kind: output, shape index: {}]
  %s11 = sld [smem:[#allocation0]]
  $region97: #{tpu_custom_call.1} parent=0
    _
  %s13 = ssub.s32 1, %s11
  %s14 = scalar_select 0, %s13, %s11
  $region1: #{tpu_custom_call.1} parent=0
    #allocation2 [shape = 'u8[8192]{0}', space=vmem, size = 0x2000, scoped, tag = 'input window, operand 0']
    #allocation3 [shape = 's32[2]{0}', space=sflag, size = 0x8, scoped, tag = 'scoped memory for tpu_custom_call.1']
    #allocation4 [shape = 's32[2]{0}', space=sflag, size = 0x8, scoped, tag = 'scoped memory for tpu_custom_call.1']
    #allocation5 [shape = 'u8[8192]{0}', space=vmem, size = 0x2000, scoped, tag = 'input window, operand 1']
    #allocation6 [shape = 's32[2]{0}', space=sflag, size = 0x8, scoped, tag = 'scoped memory for tpu_custom_call.1']
    #allocation7 [shape = 'u8[16384]{0}', space=vmem, size = 0x4000, scoped, tag = 'input window, operand 2, single buffered']
    #allocation8 [shape = 'u8[16384]{0}', space=vmem, size = 0x4000, scoped, tag = 'input window, operand 3, single buffered']
    #allocation9 [shape = 's32[1]{0}', space=sflag, size = 0x4, scoped, tag = 'scoped memory for tpu_custom_call.1']
    #allocation10 [shape = 'u8[16384]{0}', space=vmem, size = 0x4000, scoped, tag = 'input window, operand 4, single buffered']
    #allocation11 [shape = 'u8[16384]{0}', space=vmem, size = 0x4000, scoped, tag = 'input window, operand 5, single buffered']
    #allocation12 [shape = 's32[1]{0}', space=sflag, size = 0x4, scoped, tag = 'scoped memory for tpu_custom_call.1']
    #allocation13 [shape = 'u8[8192]{0}', space=vmem, size = 0x2000, scoped, tag = 'output window, operand 0']
    %15 = vsyncpa [#allocation3], 0
    %s16 = scalar_lea.sflag [#allocation3], 1
    %17 = vsyncpa %s16, 0
    %18 = vsyncpa [#allocation6], 0
    %s19 = scalar_lea.sflag [#allocation6], 1
    %20 = vsyncpa %s19, 0
    %21 = vsyncpa [#allocation9], 0
    %22 = vsyncpa [#allocation12], 0
    %23 = vsyncpa [#allocation4], 0
    %s24 = scalar_lea.sflag [#allocation4], 1
    %25 = vsyncpa %s24, 0
    loop: start=0, step=1, limit=4
    $region2: #{tpu_custom_call.1} parent=1 // loop_pre_header
      _
    $region3: #{tpu_custom_call.1} parent=1 // loop_header
      %s27 = sphi 0, %s31
      %p28 = scmp.ge.s32.totalorder %s27, 4
      %s37 = sphi 0, %s39
      %s40 = sphi 0, %s37
      %s41 = sphi 0, %s40
      %s57 = sphi 0, %s41
      %s63 = sphi 0, %s65
      %s66 = sphi 0, %s63
      %s67 = sphi 0, %s66
      %s83 = sphi 0, %s67
      %s87 = sphi 0, %s87
      %s89 = sphi 0, %s87
      %s90 = sphi 0, %s89
      %s104 = sphi 0, %s90
      %s108 = sphi 0, %s108
      %s110 = sphi 0, %s108
      %s111 = sphi 0, %s110
      %s125 = sphi 0, %s111
      %s129 = sphi 0, %s129
      %s131 = sphi 0, %s129
      %s132 = sphi 0, %s131
      %s146 = sphi 0, %s132
      %s150 = sphi 0, %s150
      %s152 = sphi 0, %s150
      %s153 = sphi 0, %s152
      %s167 = sphi 0, %s153
      %s171 = sphi 0, %s171
      %s173 = sphi 0, %s171
      %s174 = sphi 0, %s173
      %s188 = sphi 0, %s174
      %s192 = sphi 0, %s192
      %s194 = sphi 0, %s192
      %s195 = sphi 0, %s194
      %s209 = sphi 0, %s195
      %s213 = sphi 0, %s213
      %s215 = sphi 0, %s213
      %s216 = sphi 0, %s215
      %s230 = sphi 0, %s216
      %s234 = sphi 0, %s234
      %s236 = sphi 0, %s234
      %s237 = sphi 0, %s236
      %s251 = sphi 0, %s237
      %s257 = sphi 0, %s259
      %s260 = sphi 0, %s257
      %s261 = sphi 0, %s260
      %s277 = sphi 0, %s261
    $region4: #{tpu_custom_call.1} parent=1 // loop_header_branch
      %30 = sbr.rel (%p28) target = $region8
    $region5: #{tpu_custom_call.1} parent=1 // loop_body
      %s32 = ssub.s32 %s27, 1
      %s33 = ssub.s32 %s27, 2
      %s34 = sadd.s32 %s27, 1
      %s35 = ssub.s32 %s27, %s34
      %p36 = scmp.eq.s32.totalorder %s35, 0
      %s38 = sadd.s32 %s37, 1
      %s39 = scalar_select %p36, %s37, %s38
      %p42 = pneg %p36
      %p43 = scmp.eq.s32.totalorder %s27, 1
      %p44 = por %p42, %p43
      %p45 = scmp.ne.s32.totalorder %s37, %s40
      %p46 = scmp.eq.s32.totalorder %s27, 0
      %p47 = por %p45, %p46
      %p48 = scmp.ne.s32.totalorder %s37, %s40
      %p49 = scmp.eq.s32.totalorder %s32, 1
      %p50 = por %p48, %p49
      %p51 = scmp.ne.s32.totalorder %s40, %s41
      %p52 = scmp.eq.s32.totalorder %s32, 0
      %p53 = por %p51, %p52
      %p54 = scmp.ne.s32.totalorder %s40, %s41
      %p55 = scmp.eq.s32.totalorder %s33, 1
      %p56 = por %p54, %p55
      %p58 = scmp.ne.s32.totalorder %s41, %s57
      %p59 = scmp.eq.s32.totalorder %s33, 0
      %p60 = por %p58, %p59
      %s61 = ssub.s32 %s27, %s34
      %p62 = scmp.eq.s32.totalorder %s61, 0
      %s64 = sadd.s32 %s63, 1
      %s65 = scalar_select %p62, %s63, %s64
      %p68 = pneg %p62
      %p69 = scmp.eq.s32.totalorder %s27, 1
      %p70 = por %p68, %p69
      %p71 = scmp.ne.s32.totalorder %s63, %s66
      %p72 = scmp.eq.s32.totalorder %s27, 0
      %p73 = por %p71, %p72
      %p74 = scmp.ne.s32.totalorder %s63, %s66
      %p75 = scmp.eq.s32.totalorder %s32, 1
      %p76 = por %p74, %p75
      %p77 = scmp.ne.s32.totalorder %s66, %s67
      %p78 = scmp.eq.s32.totalorder %s32, 0
      %p79 = por %p77, %p78
      %p80 = scmp.ne.s32.totalorder %s66, %s67
      %p81 = scmp.eq.s32.totalorder %s33, 1
      %p82 = por %p80, %p81
      %p84 = scmp.ne.s32.totalorder %s67, %s83
      %p85 = scmp.eq.s32.totalorder %s33, 0
      %p86 = por %p84, %p85
      %s88 = sadd.s32 %s87, 1
      %p91 = scmp.eq.s32.totalorder %s27, 1
      %p92 = scmp.ne.s32.totalorder %s87, %s89
      %p93 = scmp.eq.s32.totalorder %s27, 0
      %p94 = por %p92, %p93
      %p95 = scmp.ne.s32.totalorder %s87, %s89
      %p96 = scmp.eq.s32.totalorder %s32, 1
      %p97 = por %p95, %p96
      %p98 = scmp.ne.s32.totalorder %s89, %s90
      %p99 = scmp.eq.s32.totalorder %s32, 0
      %p100 = por %p98, %p99
      %p101 = scmp.ne.s32.totalorder %s89, %s90
      %p102 = scmp.eq.s32.totalorder %s33, 1
      %p103 = por %p101, %p102
      %p105 = scmp.ne.s32.totalorder %s90, %s104
      %p106 = scmp.eq.s32.totalorder %s33, 0
      %p107 = por %p105, %p106
      %s109 = sadd.s32 %s108, 1
      %p112 = scmp.eq.s32.totalorder %s27, 1
      %p113 = scmp.ne.s32.totalorder %s108, %s110
      %p114 = scmp.eq.s32.totalorder %s27, 0
      %p115 = por %p113, %p114
      %p116 = scmp.ne.s32.totalorder %s108, %s110
      %p117 = scmp.eq.s32.totalorder %s32, 1
      %p118 = por %p116, %p117
      %p119 = scmp.ne.s32.totalorder %s110, %s111
      %p120 = scmp.eq.s32.totalorder %s32, 0
      %p121 = por %p119, %p120
      %p122 = scmp.ne.s32.totalorder %s110, %s111
      %p123 = scmp.eq.s32.totalorder %s33, 1
      %p124 = por %p122, %p123
      %p126 = scmp.ne.s32.totalorder %s111, %s125
      %p127 = scmp.eq.s32.totalorder %s33, 0
      %p128 = por %p126, %p127
      %s130 = sadd.s32 %s129, 1
      %p133 = scmp.eq.s32.totalorder %s27, 1
      %p134 = scmp.ne.s32.totalorder %s129, %s131
      %p135 = scmp.eq.s32.totalorder %s27, 0
      %p136 = por %p134, %p135
      %p137 = scmp.ne.s32.totalorder %s129, %s131
      %p138 = scmp.eq.s32.totalorder %s32, 1
      %p139 = por %p137, %p138
      %p140 = scmp.ne.s32.totalorder %s131, %s132
      %p141 = scmp.eq.s32.totalorder %s32, 0
      %p142 = por %p140, %p141
      %p143 = scmp.ne.s32.totalorder %s131, %s132
      %p144 = scmp.eq.s32.totalorder %s33, 1
      %p145 = por %p143, %p144
      %p147 = scmp.ne.s32.totalorder %s132, %s146
      %p148 = scmp.eq.s32.totalorder %s33, 0
      %p149 = por %p147, %p148
      %s151 = sadd.s32 %s150, 1
      %p154 = scmp.eq.s32.totalorder %s27, 1
      %p155 = scmp.ne.s32.totalorder %s150, %s152
      %p156 = scmp.eq.s32.totalorder %s27, 0
      %p157 = por %p155, %p156
      %p158 = scmp.ne.s32.totalorder %s150, %s152
      %p159 = scmp.eq.s32.totalorder %s32, 1
      %p160 = por %p158, %p159
      %p161 = scmp.ne.s32.totalorder %s152, %s153
      %p162 = scmp.eq.s32.totalorder %s32, 0
      %p163 = por %p161, %p162
      %p164 = scmp.ne.s32.totalorder %s152, %s153
      %p165 = scmp.eq.s32.totalorder %s33, 1
      %p166 = por %p164, %p165
      %p168 = scmp.ne.s32.totalorder %s153, %s167
      %p169 = scmp.eq.s32.totalorder %s33, 0
      %p170 = por %p168, %p169
      %s172 = sadd.s32 %s171, 1
      %p175 = scmp.eq.s32.totalorder %s27, 1
      %p176 = scmp.ne.s32.totalorder %s171, %s173
      %p177 = scmp.eq.s32.totalorder %s27, 0
      %p178 = por %p176, %p177
      %p179 = scmp.ne.s32.totalorder %s171, %s173
      %p180 = scmp.eq.s32.totalorder %s32, 1
      %p181 = por %p179, %p180
      %p182 = scmp.ne.s32.totalorder %s173, %s174
      %p183 = scmp.eq.s32.totalorder %s32, 0
      %p184 = por %p182, %p183
      %p185 = scmp.ne.s32.totalorder %s173, %s174
      %p186 = scmp.eq.s32.totalorder %s33, 1
      %p187 = por %p185, %p186
      %p189 = scmp.ne.s32.totalorder %s174, %s188
      %p190 = scmp.eq.s32.totalorder %s33, 0
      %p191 = por %p189, %p190
      %s193 = sadd.s32 %s192, 1
      %p196 = scmp.eq.s32.totalorder %s27, 1
      %p197 = scmp.ne.s32.totalorder %s192, %s194
      %p198 = scmp.eq.s32.totalorder %s27, 0
      %p199 = por %p197, %p198
      %p200 = scmp.ne.s32.totalorder %s192, %s194
      %p201 = scmp.eq.s32.totalorder %s32, 1
      %p202 = por %p200, %p201
      %p203 = scmp.ne.s32.totalorder %s194, %s195
      %p204 = scmp.eq.s32.totalorder %s32, 0
      %p205 = por %p203, %p204
      %p206 = scmp.ne.s32.totalorder %s194, %s195
      %p207 = scmp.eq.s32.totalorder %s33, 1
      %p208 = por %p206, %p207
      %p210 = scmp.ne.s32.totalorder %s195, %s209
      %p211 = scmp.eq.s32.totalorder %s33, 0
      %p212 = por %p210, %p211
      %s214 = sadd.s32 %s213, 1
      %p217 = scmp.eq.s32.totalorder %s27, 1
      %p218 = scmp.ne.s32.totalorder %s213, %s215
      %p219 = scmp.eq.s32.totalorder %s27, 0
      %p220 = por %p218, %p219
      %p221 = scmp.ne.s32.totalorder %s213, %s215
      %p222 = scmp.eq.s32.totalorder %s32, 1
      %p223 = por %p221, %p222
      %p224 = scmp.ne.s32.totalorder %s215, %s216
      %p225 = scmp.eq.s32.totalorder %s32, 0
      %p226 = por %p224, %p225
      %p227 = scmp.ne.s32.totalorder %s215, %s216
      %p228 = scmp.eq.s32.totalorder %s33, 1
      %p229 = por %p227, %p228
      %p231 = scmp.ne.s32.totalorder %s216, %s230
      %p232 = scmp.eq.s32.totalorder %s33, 0
      %p233 = por %p231, %p232
      %s235 = sadd.s32 %s234, 1
      %p238 = scmp.eq.s32.totalorder %s27, 1
      %p239 = scmp.ne.s32.totalorder %s234, %s236
      %p240 = scmp.eq.s32.totalorder %s27, 0
      %p241 = por %p239, %p240
      %p242 = scmp.ne.s32.totalorder %s234, %s236
      %p243 = scmp.eq.s32.totalorder %s32, 1
      %p244 = por %p242, %p243
      %p245 = scmp.ne.s32.totalorder %s236, %s237
      %p246 = scmp.eq.s32.totalorder %s32, 0
      %p247 = por %p245, %p246
      %p248 = scmp.ne.s32.totalorder %s236, %s237
      %p249 = scmp.eq.s32.totalorder %s33, 1
      %p250 = por %p248, %p249
      %p252 = scmp.ne.s32.totalorder %s237, %s251
      %p253 = scmp.eq.s32.totalorder %s33, 0
      %p254 = por %p252, %p253
      %s255 = ssub.s32 %s27, %s34
      %p256 = scmp.eq.s32.totalorder %s255, 0
      %s258 = sadd.s32 %s257, 1
      %s259 = scalar_select %p256, %s257, %s258
      %p262 = pneg %p256
      %p263 = scmp.eq.s32.totalorder %s27, 1
      %p264 = por %p262, %p263
      %p265 = scmp.ne.s32.totalorder %s257, %s260
      %p266 = scmp.eq.s32.totalorder %s27, 0
      %p267 = por %p265, %p266
      %p268 = scmp.ne.s32.totalorder %s257, %s260
      %p269 = scmp.eq.s32.totalorder %s32, 1
      %p270 = por %p268, %p269
      %p271 = scmp.ne.s32.totalorder %s260, %s261
      %p272 = scmp.eq.s32.totalorder %s32, 0
      %p273 = por %p271, %p272
      %p274 = scmp.ne.s32.totalorder %s260, %s261
      %p275 = scmp.eq.s32.totalorder %s33, 1
      %p276 = por %p274, %p275
      %p278 = scmp.ne.s32.totalorder %s261, %s277
      %p279 = scmp.eq.s32.totalorder %s33, 0
      %p280 = por %p278, %p279
      %p281 = scmp.le.s32.totalorder 1, %s27
      %p282 = scmp.lt.s32.totalorder %s27, 3
      %p283 = pnand %p281, %p282
      %p284 = pneg %p283
      // Predicated region
      $region9: #{tpu_custom_call.1} parent=5 // pred_check
        _
      $region10: #{tpu_custom_call.1} parent=5 // pred_check_branch
        %286 = sbr.rel (%p283) target = $region12
      $region11: #{tpu_custom_call.1} parent=5 // pred_region
        %s287 = ssub.s32 %s27, 1
        // Predicated region
        $region13: #{tpu_custom_call.1} parent=11 // pred_check
          %p288 = pneg %p100
        $region14: #{tpu_custom_call.1} parent=11 // pred_check_branch
          %290 = sbr.rel (%p288) target = $region16
        $region15: #{tpu_custom_call.1} parent=11 // pred_region
          %292 = vsyncadd [#allocation6], 0
          %s293 = sshll.u32 %s2, 4
          %s294 = int_to_ptr.hbm [resolvable:$true] %s293
          %s295 = sshll.u32 [#allocation7], 4
          %s296 = int_to_ptr.vmem [resolvable:$true] %s295
          %301 = dma.hbm_to_vmem [thread:$0]  %s294, 512, %s296, [#allocation6], 128, 128, 8
        $region16: #{tpu_custom_call.1} parent=11 // pred_fallthru
          _
        // Predicated region
        $region17: #{tpu_custom_call.1} parent=11 // pred_check
          %p302 = pneg %p121
        $region18: #{tpu_custom_call.1} parent=11 // pred_check_branch
          %304 = sbr.rel (%p302) target = $region20
        $region19: #{tpu_custom_call.1} parent=11 // pred_region
          %306 = vsyncadd [#allocation9], 0
          %s307 = sshll.u32 %s3, 4
          %s308 = int_to_ptr.hbm [resolvable:$true] %s307
          %s309 = sshll.u32 [#allocation8], 4
          %s310 = int_to_ptr.vmem [resolvable:$true] %s309
          %315 = dma.hbm_to_vmem [thread:$0]  %s308, 512, %s310, [#allocation9], 128, 128, 8
        $region20: #{tpu_custom_call.1} parent=11 // pred_fallthru
          _
        // Predicated region
        $region21: #{tpu_custom_call.1} parent=11 // pred_check
          %p316 = pneg %p142
        $region22: #{tpu_custom_call.1} parent=11 // pred_check_branch
          %318 = sbr.rel (%p316) target = $region24
        $region23: #{tpu_custom_call.1} parent=11 // pred_region
          %320 = vsyncadd [#allocation9], 0
          %s321 = sshll.u32 %s4, 4
          %s322 = int_to_ptr.hbm [resolvable:$true] %s321
          %s323 = sshll.u32 [#allocation10], 4
          %s324 = int_to_ptr.vmem [resolvable:$true] %s323
          %329 = dma.hbm_to_vmem [thread:$0]  %s322, 512, %s324, [#allocation9], 128, 128, 8
        $region24: #{tpu_custom_call.1} parent=11 // pred_fallthru
          _
        // Predicated region
        $region25: #{tpu_custom_call.1} parent=11 // pred_check
          %p330 = pneg %p163
        $region26: #{tpu_custom_call.1} parent=11 // pred_check_branch
          %332 = sbr.rel (%p330) target = $region28
        $region27: #{tpu_custom_call.1} parent=11 // pred_region
          %334 = vsyncadd [#allocation12], 0
          %s335 = sshll.u32 %s5, 4
          %s336 = int_to_ptr.hbm [resolvable:$true] %s335
          %s337 = sshll.u32 [#allocation11], 4
          %s338 = int_to_ptr.vmem [resolvable:$true] %s337
          %343 = dma.hbm_to_vmem [thread:$0]  %s336, 512, %s338, [#allocation12], 128, 128, 8
        $region28: #{tpu_custom_call.1} parent=11 // pred_fallthru
          _
        // Predicated region
        $region29: #{tpu_custom_call.1} parent=11 // pred_check
          %p344 = pneg %p184
        $region30: #{tpu_custom_call.1} parent=11 // pred_check_branch
          %346 = sbr.rel (%p344) target = $region32
        $region31: #{tpu_custom_call.1} parent=11 // pred_region
          _
        $region32: #{tpu_custom_call.1} parent=11 // pred_fallthru
          _
        // Predicated region
        $region33: #{tpu_custom_call.1} parent=11 // pred_check
          %p347 = pneg %p205
        $region34: #{tpu_custom_call.1} parent=11 // pred_check_branch
          %349 = sbr.rel (%p347) target = $region36
        $region35: #{tpu_custom_call.1} parent=11 // pred_region
          _
        $region36: #{tpu_custom_call.1} parent=11 // pred_fallthru
          _
        // Predicated region
        $region37: #{tpu_custom_call.1} parent=11 // pred_check
          %p350 = pneg %p226
        $region38: #{tpu_custom_call.1} parent=11 // pred_check_branch
          %352 = sbr.rel (%p350) target = $region40
        $region39: #{tpu_custom_call.1} parent=11 // pred_region
          _
        $region40: #{tpu_custom_call.1} parent=11 // pred_fallthru
          _
        // Predicated region
        $region41: #{tpu_custom_call.1} parent=11 // pred_check
          %p353 = pneg %p247
        $region42: #{tpu_custom_call.1} parent=11 // pred_check_branch
          %355 = sbr.rel (%p353) target = $region44
        $region43: #{tpu_custom_call.1} parent=11 // pred_region
          _
        $region44: #{tpu_custom_call.1} parent=11 // pred_fallthru
          _
      $region12: #{tpu_custom_call.1} parent=5 // pred_fallthru
        _
      %p356 = scmp.lt.s32.totalorder %s27, 2
      // Predicated region
      $region45: #{tpu_custom_call.1} parent=5 // pred_check
        %p357 = pneg %p356
      $region46: #{tpu_custom_call.1} parent=5 // pred_check_branch
        %359 = sbr.rel (%p357) target = $region48
      $region47: #{tpu_custom_call.1} parent=5 // pred_region
        // Predicated region
        $region49: #{tpu_custom_call.1} parent=47 // pred_check
          %p360 = pneg %p47
        $region50: #{tpu_custom_call.1} parent=47 // pred_check_branch
          %362 = sbr.rel (%p360) target = $region52
        $region51: #{tpu_custom_call.1} parent=47 // pred_region
          %s363 = sand.u32 %s37, 1
          %s364 = scalar_lea.sflag [#allocation3], %s363
          %s365 = sand.u32 %s37, 1
          %s366 = smul.addr %s365, 8
          %s367 = scalar_lea.vmem [#allocation2], %s366
          %369 = vsyncadd %s364, 0
          %s370 = smul.addr %s27, 8
          %s371 = scalar_lea.hbm %s0, %s370
          %s373 = sshll.u32 %s371, 4
          %s374 = int_to_ptr.hbm [resolvable:$true] %s373
          %s375 = sshll.u32 %s367, 4
          %s376 = int_to_ptr.vmem [resolvable:$true] %s375
          %378 = dma.hbm_to_vmem [thread:$0]  %s374, 128, %s376, %s364
        $region52: #{tpu_custom_call.1} parent=47 // pred_fallthru
          _
        // Predicated region
        $region53: #{tpu_custom_call.1} parent=47 // pred_check
          %p379 = pneg %p73
        $region54: #{tpu_custom_call.1} parent=47 // pred_check_branch
          %381 = sbr.rel (%p379) target = $region56
        $region55: #{tpu_custom_call.1} parent=47 // pred_region
          %s382 = sand.u32 %s27, 1
          %s383 = scalar_lea.sflag [#allocation6], %s382
          %s384 = sand.u32 %s63, 1
          %s385 = smul.addr %s384, 8
          %s386 = scalar_lea.vmem [#allocation5], %s385
          %388 = vsyncadd %s383, 0
          %s389 = smul.addr %s27, 8
          %s390 = scalar_lea.hbm %s1, %s389
          %s392 = sshll.u32 %s390, 4
          %s393 = int_to_ptr.hbm [resolvable:$true] %s392
          %s394 = sshll.u32 %s386, 4
          %s395 = int_to_ptr.vmem [resolvable:$true] %s394
          %397 = dma.hbm_to_vmem [thread:$0]  %s393, 128, %s395, %s383
        $region56: #{tpu_custom_call.1} parent=47 // pred_fallthru
          _
      $region48: #{tpu_custom_call.1} parent=5 // pred_fallthru
        _
      %p398 = scmp.le.s32.totalorder 1, %s27
      %p399 = scmp.lt.s32.totalorder %s27, 3
      %p400 = pnand %p398, %p399
      %p401 = pneg %p400
      // Predicated region
      $region57: #{tpu_custom_call.1} parent=5 // pred_check
        _
      $region58: #{tpu_custom_call.1} parent=5 // pred_check_branch
        %403 = sbr.rel (%p400) target = $region60
      $region59: #{tpu_custom_call.1} parent=5 // pred_region
        %s404 = ssub.s32 %s27, 1
        %s405 = sand.u32 %s40, 1
        %s406 = scalar_lea.sflag [#allocation3], %s405
        %s407 = sand.u32 %s40, 1
        %s408 = smul.addr %s407, 8
        %s409 = scalar_lea.vmem [#allocation2], %s408
        // Predicated region
        $region61: #{tpu_custom_call.1} parent=59 // pred_check
          %p410 = pneg %p53
        $region62: #{tpu_custom_call.1} parent=59 // pred_check_branch
          %412 = sbr.rel (%p410) target = $region64
        $region63: #{tpu_custom_call.1} parent=59 // pred_region
          %414 = dma.done %s406, 128
        $region64: #{tpu_custom_call.1} parent=59 // pred_fallthru
          _
        %s415 = sand.u32 %s32, 1
        %s416 = scalar_lea.sflag [#allocation6], %s415
        %s417 = sand.u32 %s66, 1
        %s418 = smul.addr %s417, 8
        %s419 = scalar_lea.vmem [#allocation5], %s418
        // Predicated region
        $region65: #{tpu_custom_call.1} parent=59 // pred_check
          %p420 = pneg %p79
        $region66: #{tpu_custom_call.1} parent=59 // pred_check_branch
          %422 = sbr.rel (%p420) target = $region68
        $region67: #{tpu_custom_call.1} parent=59 // pred_region
          %424 = dma.done %s416, 128
        $region68: #{tpu_custom_call.1} parent=59 // pred_fallthru
          _
        // Predicated region
        $region69: #{tpu_custom_call.1} parent=59 // pred_check
          %p425 = pneg %p100
        $region70: #{tpu_custom_call.1} parent=59 // pred_check_branch
          %427 = sbr.rel (%p425) target = $region72
        $region71: #{tpu_custom_call.1} parent=59 // pred_region
          %429 = dma.done [#allocation6], 512
        $region72: #{tpu_custom_call.1} parent=59 // pred_fallthru
          _
        // Predicated region
        $region73: #{tpu_custom_call.1} parent=59 // pred_check
          %p430 = pneg %p121
        $region74: #{tpu_custom_call.1} parent=59 // pred_check_branch
          %432 = sbr.rel (%p430) target = $region76
        $region75: #{tpu_custom_call.1} parent=59 // pred_region
          %434 = dma.done [#allocation9], 512
        $region76: #{tpu_custom_call.1} parent=59 // pred_fallthru
          _
        // Predicated region
        $region77: #{tpu_custom_call.1} parent=59 // pred_check
          %p435 = pneg %p142
        $region78: #{tpu_custom_call.1} parent=59 // pred_check_branch
          %437 = sbr.rel (%p435) target = $region80
        $region79: #{tpu_custom_call.1} parent=59 // pred_region
          %439 = dma.done [#allocation9], 512
        $region80: #{tpu_custom_call.1} parent=59 // pred_fallthru
          _
        // Predicated region
        $region81: #{tpu_custom_call.1} parent=59 // pred_check
          %p440 = pneg %p163
        $region82: #{tpu_custom_call.1} parent=59 // pred_check_branch
          %442 = sbr.rel (%p440) target = $region84
        $region83: #{tpu_custom_call.1} parent=59 // pred_region
          %444 = dma.done [#allocation12], 512
        $region84: #{tpu_custom_call.1} parent=59 // pred_fallthru
          _
        %s445 = sand.u32 %s40, 1
        %s446 = scalar_lea.sflag [#allocation3], %s445
        %s447 = sand.u32 %s40, 1
        %s448 = smul.addr %s447, 8
        %s449 = scalar_lea.vmem [#allocation2], %s448
        %p450 = pneg %p53
        %p451 = pneg %p50
        %s452 = sand.u32 %s32, 1
        %s453 = scalar_lea.sflag [#allocation6], %s452
        %s454 = sand.u32 %s66, 1
        %s455 = smul.addr %s454, 8
        %s456 = scalar_lea.vmem [#allocation5], %s455
        %p457 = pneg %p79
        %p458 = pneg %p76
        %p459 = pneg %p100
        %p460 = pneg %p97
        %p461 = pneg %p121
        %p462 = pneg %p118
        %p463 = pneg %p142
        %p464 = pneg %p139
        %p465 = pneg %p163
        %p466 = pneg %p160
        %p467 = pneg %p184
        %p468 = pneg %p181
        %p469 = pneg %p205
        %p470 = pneg %p202
        %p471 = pneg %p226
        %p472 = pneg %p223
        %p473 = pneg %p247
        %p474 = pneg %p244
        %p475 = pneg %p273
        %p476 = pneg %p270
        %s477 = sand.u32 %s260, 1
        %s478 = scalar_lea.sflag [#allocation4], %s477
        %s479 = sand.u32 %s260, 1
        %s480 = smul.addr %s479, 8
        %s481 = scalar_lea.vmem [#allocation13], %s480
        %v482 = vld [vmem:[%s409] sm:$0xff]
        %v483 = vld [vmem:[%s419] sm:$0xff]
        %v484 = vld [vmem:[#allocation7] sm:$0xff]
        %v485 = vld [vmem:[#allocation7 + $0x8] sm:$0xff]
        %v486 = vld [vmem:[#allocation7 + $0x10] sm:$0xff]
        %v487 = vld [vmem:[#allocation7 + $0x18] sm:$0xff]
        %v488 = vld [vmem:[#allocation8] sm:$0xff]
        %v489 = vld [vmem:[#allocation8 + $0x8] sm:$0xff]
        %v490 = vld [vmem:[#allocation8 + $0x10] sm:$0xff]
        %v491 = vld [vmem:[#allocation8 + $0x18] sm:$0xff]
        %vm492 = vcmask 261120
        %v494 = vsel %vm492, %v483, 0
        %496 = vmatpush.msra.mxu0 0.0
        %497 = vmatpush.msra.mxu0 0.0
        %498 = vmatpush.msra.mxu0 0.0
        %499 = vmatpush.msra.mxu0 0.0
        %500 = vmatpush.msra.mxu0 0.0
        %501 = vmatpush.msra.mxu0 0.0
        %502 = vmatpush.msra.mxu0 0.0
        %503 = vmatpush.msra.mxu0 0.0
        %504 = vmatpush.msra.mxu0 0.0
        %505 = vmatpush.msra.mxu0 0.0
        %506 = vmatpush.msra.mxu0 0.0
        %507 = vmatpush.msra.mxu0 0.0
        %508 = vmatpush.msra.mxu0 %v491
        %509 = vmatpush.msra.mxu0 %v490
        %510 = vmatpush.msra.mxu0 %v489
        %511 = vmatpush.msra.mxu0 %v488
        %512 = vmatmul.f32.gmra.mxu0 %v494
        %v513 = vpop.f32.mrf.mxu0
        %v514 = vadd.f32 0.0, %v513
        %515 = vdwg.mxu0
        %v517 = vsel %vm492, %v482, 0
        %519 = vmatpush.msra.mxu0 0.0
        %520 = vmatpush.msra.mxu0 0.0
        %521 = vmatpush.msra.mxu0 0.0
        %522 = vmatpush.msra.mxu0 0.0
        %523 = vmatpush.msra.mxu0 0.0
        %524 = vmatpush.msra.mxu0 0.0
        %525 = vmatpush.msra.mxu0 0.0
        %526 = vmatpush.msra.mxu0 0.0
        %527 = vmatpush.msra.mxu0 0.0
        %528 = vmatpush.msra.mxu0 0.0
        %529 = vmatpush.msra.mxu0 0.0
        %530 = vmatpush.msra.mxu0 0.0
        %531 = vmatpush.msra.mxu0 %v487
        %532 = vmatpush.msra.mxu0 %v486
        %533 = vmatpush.msra.mxu0 %v485
        %534 = vmatpush.msra.mxu0 %v484
        %535 = vmatmul.f32.gmra.mxu0 %v517
        %v536 = vpop.f32.mrf.mxu0
        %v537 = vadd.f32 %v514, %v536
        %538 = vdwg.mxu0
        %v539 = vld [vmem:[%s6] sm:$0x1]
        %v541 = vperm.slane %v539, 0
        %v543 = vadd.f32 %v537, %v541
        %v544 = vld [vmem:[#allocation10] sm:$0xff]
        %v545 = vld [vmem:[#allocation10 + $0x8] sm:$0xff]
        %v546 = vld [vmem:[#allocation10 + $0x10] sm:$0xff]
        %v547 = vld [vmem:[#allocation10 + $0x18] sm:$0xff]
        %v548 = vld [vmem:[#allocation11] sm:$0xff]
        %v549 = vld [vmem:[#allocation11 + $0x8] sm:$0xff]
        %v550 = vld [vmem:[#allocation11 + $0x10] sm:$0xff]
        %v551 = vld [vmem:[#allocation11 + $0x18] sm:$0xff]
        %552 = vmatpush.msra.mxu0 0.0
        %553 = vmatpush.msra.mxu0 0.0
        %554 = vmatpush.msra.mxu0 0.0
        %555 = vmatpush.msra.mxu0 0.0
        %556 = vmatpush.msra.mxu0 0.0
        %557 = vmatpush.msra.mxu0 0.0
        %558 = vmatpush.msra.mxu0 0.0
        %559 = vmatpush.msra.mxu0 0.0
        %560 = vmatpush.msra.mxu0 0.0
        %561 = vmatpush.msra.mxu0 0.0
        %562 = vmatpush.msra.mxu0 0.0
        %563 = vmatpush.msra.mxu0 0.0
        %564 = vmatpush.msra.mxu0 %v551
        %565 = vmatpush.msra.mxu0 %v550
        %566 = vmatpush.msra.mxu0 %v549
        %567 = vmatpush.msra.mxu0 %v548
        %568 = vmatmul.f32.gmra.mxu0 %v494
        %v569 = vpop.f32.mrf.mxu0
        %v570 = vadd.f32 0.0, %v569
        %571 = vdwg.mxu0
        %572 = vmatpush.msra.mxu0 0.0
        %573 = vmatpush.msra.mxu0 0.0
        %574 = vmatpush.msra.mxu0 0.0
        %575 = vmatpush.msra.mxu0 0.0
        %576 = vmatpush.msra.mxu0 0.0
        %577 = vmatpush.msra.mxu0 0.0
        %578 = vmatpush.msra.mxu0 0.0
        %579 = vmatpush.msra.mxu0 0.0
        %580 = vmatpush.msra.mxu0 0.0
        %581 = vmatpush.msra.mxu0 0.0
        %582 = vmatpush.msra.mxu0 0.0
        %583 = vmatpush.msra.mxu0 0.0
        %584 = vmatpush.msra.mxu0 %v547
        %585 = vmatpush.msra.mxu0 %v546
        %586 = vmatpush.msra.mxu0 %v545
        %587 = vmatpush.msra.mxu0 %v544
        %588 = vmatmul.f32.gmra.mxu0 %v517
        %v589 = vpop.f32.mrf.mxu0
        %v590 = vadd.f32 %v570, %v589
        %591 = vdwg.mxu0
        %v592 = vld [vmem:[%s7] sm:$0x1]
        %v594 = vperm.slane %v592, 0
        %v596 = vadd.f32 %v590, %v594
        %v597 = vxor.u32 %v543, 2147483648
        %v598 = vmul.f32 %v597, 1.442695
        %v599 = vpow.pop %v598
        %v600 = vadd.f32 %v599, 1.0
        %v601 = vrcp.pop %v600
        %v602 = vmul.f32 %v600, %v601
        %v603 = vsub.f32 1.0, %v602
        %v604 = vmul.f32 %v601, %v603
        %v605 = vadd.f32 %v601, %v604
        %vm606 = vweird.f32 %v600
        %vm607 = vweird.f32 %v601
        %vm608 = vmor %vm606, %vm607
        %v609 = vsel %vm608, %v601, %v605
        %v610 = vand.u32 2147483647, %v600
        %vm611 = vcmp.eq.f32.partialorder %v610, 8.507059e+37
        %v612 = vand.u32 %v600, 2147483648
        %v613 = vor.u32 1.1754944e-38, %v612
        %v614 = vsel %vm611, %v613, %v609
        %v615 = vmul.f32 1.0, %v614
        %v616 = vxor.u32 %v596, 2147483648
        %v617 = vmul.f32 %v616, 1.442695
        %v618 = vpow.pop %v617
        %v619 = vadd.f32 %v618, 1.0
        %v620 = vrcp.pop %v619
        %v621 = vmul.f32 %v619, %v620
        %v622 = vsub.f32 1.0, %v621
        %v623 = vmul.f32 %v620, %v622
        %v624 = vadd.f32 %v620, %v623
        %vm625 = vweird.f32 %v619
        %vm626 = vweird.f32 %v620
        %vm627 = vmor %vm625, %vm626
        %v628 = vsel %vm627, %v620, %v624
        %v629 = vand.u32 2147483647, %v619
        %vm630 = vcmp.eq.f32.partialorder %v629, 8.507059e+37
        %v631 = vand.u32 %v619, 2147483648
        %v632 = vor.u32 1.1754944e-38, %v631
        %v633 = vsel %vm630, %v632, %v628
        %v634 = vmul.f32 1.0, %v633
        %v635 = vmul.f32 %v615, %v482
        %v636 = vmul.f32 %v634, %v483
        %v637 = vadd.f32 %v635, %v636
        %v638 = vld [vmem:[%s8] sm:$0x1]
        %v639 = vld [vmem:[%s9] sm:$0x1]
        %v640 = vsel %vm492, %v637, 0.0
        %641 = vadd.xlane.f32.xlu0 %v640
        %v642 = vpop.xlane.xlu0 %641
        %v643 = vrcp.pop 32.0
        %v644 = vmul.f32 32.0, %v643
        %v645 = vsub.f32 1.0, %v644
        %v646 = vmul.f32 %v643, %v645
        %v647 = vadd.f32 %v643, %v646
        %vm648 = vweird.f32 %v643
        %v649 = vsel %vm648, %v643, %v647
        %v650 = vmul.f32 %v642, %v649
        %v651 = vmul.f32 %v637, %v637
        %v652 = vsel %vm492, %v651, 0.0
        %653 = vadd.xlane.f32.xlu0 %v652
        %v654 = vpop.xlane.xlu0 %653
        %v655 = vmul.f32 %v654, %v649
        %v656 = vmul.f32 %v650, %v650
        %v657 = vsub.f32 %v655, %v656
        %v658 = vmax.f32 %v657, 0.0
        %v659 = vsub.f32 %v637, %v650
        %v660 = vadd.f32 %v658, 1e-05
        %v661 = vrsqrt.pop %v660
        %v662 = vmul.f32 %v661, %v660
        %v663 = vmul.f32 %v662, %v661
        %v664 = vmul.f32 0.5, %v663
        %v665 = vsub.f32 1.5, %v664
        %v666 = vmul.f32 %v661, %v665
        %vm667 = vweird.f32 %v660
        %vm668 = vweird.f32 %v661
        %vm669 = vmor %vm667, %vm668
        %v670 = vsel %vm669, %v661, %v666
        %v671 = vmul.f32 %v659, %v670
        %v673 = vperm.slane %v638, 0
        %v675 = vmul.f32 %v671, %v673
        %v677 = vperm.slane %v639, 0
        %v679 = vadd.f32 %v675, %v677
        %680 = vst.msk [vmem:[%s481] sm:$0xff] %vm492, %v679
        %s681 = sand.u32 %s260, 1
        %s682 = scalar_lea.sflag [#allocation4], %s681
        %s683 = sand.u32 %s260, 1
        %s684 = smul.addr %s683, 8
        %s685 = scalar_lea.vmem [#allocation13], %s684
        // Predicated region
        $region85: #{tpu_custom_call.1} parent=59 // pred_check
          %p686 = pneg %p270
        $region86: #{tpu_custom_call.1} parent=59 // pred_check_branch
          %688 = sbr.rel (%p686) target = $region88
        $region87: #{tpu_custom_call.1} parent=59 // pred_region
          %690 = vsyncadd %s682, 0
          %s691 = smul.addr %s32, 8
          %s692 = scalar_lea.hbm %s10, %s691
          %s694 = sshll.u32 %s685, 4
          %s695 = int_to_ptr.vmem [resolvable:$true] %s694
          %s696 = sshll.u32 %s692, 4
          %s697 = int_to_ptr.hbm [resolvable:$true] %s696
          %699 = dma.vmem_to_hbm [thread:$0]  %s695, 128, %s697, %s682
        $region88: #{tpu_custom_call.1} parent=59 // pred_fallthru
          _
      $region60: #{tpu_custom_call.1} parent=5 // pred_fallthru
        _
      %p700 = scmp.le.s32.totalorder 2, %s27
      // Predicated region
      $region89: #{tpu_custom_call.1} parent=5 // pred_check
        %p701 = pneg %p700
      $region90: #{tpu_custom_call.1} parent=5 // pred_check_branch
        %703 = sbr.rel (%p701) target = $region92
      $region91: #{tpu_custom_call.1} parent=5 // pred_region
        %s704 = ssub.s32 %s27, 2
        // Predicated region
        $region93: #{tpu_custom_call.1} parent=91 // pred_check
          %p705 = pneg %p276
        $region94: #{tpu_custom_call.1} parent=91 // pred_check_branch
          %707 = sbr.rel (%p705) target = $region96
        $region95: #{tpu_custom_call.1} parent=91 // pred_region
          %s708 = sand.u32 %s261, 1
          %s709 = scalar_lea.sflag [#allocation4], %s708
          %s710 = sand.u32 %s261, 1
          %s711 = smul.addr %s710, 8
          %s712 = scalar_lea.vmem [#allocation13], %s711
          %714 = dma.done %s709, 128
        $region96: #{tpu_custom_call.1} parent=91 // pred_fallthru
          _
      $region92: #{tpu_custom_call.1} parent=5 // pred_fallthru
        _
    $region6: #{tpu_custom_call.1} parent=1 // loop_footer
      %s31 = sadd.s32 1, %s27
    $region7: #{tpu_custom_call.1} parent=1 // loop_footer_branch
      %26 = sbr.rel target = $region3
    $region8: #{tpu_custom_call.1} parent=1 // loop_exit
      _
    %715 = vsyncpa [#allocation3], 1
    %s716 = scalar_lea.sflag [#allocation3], 1
    %717 = vsyncpa %s716, 1
    %718 = vsyncpa [#allocation6], 1
    %s719 = scalar_lea.sflag [#allocation6], 1
    %720 = vsyncpa %s719, 1
    %721 = vsyncpa [#allocation9], 1
    %722 = vsyncpa [#allocation12], 1
    %723 = vsyncpa [#allocation4], 1
    %s724 = scalar_lea.sflag [#allocation4], 1
    %725 = vsyncpa %s724, 1

</llo_original>
